<compile_context>
chip_gen: v7x
topology: tpu7x:2x2x1
jax: 0.10.0
libtpu: 0.0.40
codegen_flags: <defaults>
</compile_context>

<pallas_src>
import functools
import math

import jax
import jax.numpy as jnp
from jax import lax
from jax.experimental import pallas as pl
from jax.experimental.pallas import tpu as pltpu

_INV_SQRT2 = 1.0 / math.sqrt(2.0)


def _mlp_kernel(x_ref, w1_ref, b1_ref, w2_ref, b2_ref, o_ref, acc_ref, *,
                approximate_gelu):
    # Grid = (m_tiles, h_tiles).  Axis 1 (hidden) is the fc2 contraction axis:
    # partial products are accumulated into the f32 VMEM scratch `acc_ref`.
    #   x_ref:  (tile_m, C_in)     bf16, k-invariant (not re-fetched per k)
    #   w1_ref: (C_in, tile_h)     bf16 slice of fc1 weight (pre-transposed)
    #   b1_ref: (1, tile_h)        f32 slice of fc1 bias
    #   w2_ref: (tile_h, C_out)    bf16 slice of fc2 weight (pre-transposed)
    #   b2_ref: (1, C_out)         f32 fc2 bias
    #   o_ref:  (tile_m, C_out)    written only on the last k step
    #   acc_ref:(tile_m, C_out)    f32 accumulator scratch
    k = pl.program_id(1)

    @pl.when(k == 0)
    def _init():
        acc_ref[...] = jnp.zeros_like(acc_ref)

    # fc1 slice: bf16 MXU operands, f32 accumulation.
    h = jnp.dot(x_ref[...], w1_ref[...], preferred_element_type=jnp.float32)
    h = h + b1_ref[...]

    if approximate_gelu:
        # tanh-approx GELU: transcendental goes to the EUP (separate VLIW slot).
        h = jax.nn.gelu(h, approximate=True)
    else:
        # Exact erf-GELU on the f32 accumulator (torch.nn.GELU() default).
        h = 0.5 * h * (1.0 + lax.erf(h * _INV_SQRT2))

    # dropout(p=0.0) -> identity
    # TODO(synk): dropout with p>0 would need pltpu.prng_seed/prng_random_bits
    # in-kernel masking; the reference config uses p=0.0.

    # Partial fc2: cast activation back to the MXU dtype, accumulate in f32.
    acc_ref[...] += jnp.dot(h.astype(w2_ref.dtype), w2_ref[...],
                            preferred_element_type=jnp.float32)

    @pl.when(k == pl.num_programs(1) - 1)
    def _finalize():
        o_ref[...] = (acc_ref[...] + b2_ref[...]).astype(o_ref.dtype)


def _round_up(x, n):
    return ((x + n - 1) // n) * n


def _tpu_tuning():
    """Per-generation defaults: v5e/v6e have 128 MiB VMEM, v7x has 64 MiB/TC."""
    vmem_bytes = 64 * 1024 * 1024
    try:
        info = pltpu.get_tpu_info()
        vmem_bytes = int(getattr(info, "vmem_capacity_bytes", vmem_bytes))
    except Exception:
        pass  # tuning-only query; fall back to the conservative (v7x) budget
    if vmem_bytes >= 100 * 1024 * 1024:          # v5e / v6e
        return dict(tile_m=512, max_tile_h=2048,
                    vmem_limit_bytes=100 * 1024 * 1024)
    return dict(tile_m=256, max_tile_h=1024,     # v7x (or unknown)
                vmem_limit_bytes=48 * 1024 * 1024)


def _pick_tile_h(hidden, max_tile_h):
    """Largest divisor of `hidden` that is a multiple of 128 and <= max_tile_h;
    falls back to the full hidden size (single K step) if none exists."""
    if hidden <= max_tile_h:
        return hidden
    t = max_tile_h - (max_tile_h % 128)
    while t >= 128:
        if hidden % t == 0:
            return t
        t -= 128
    return hidden


def mlp_pallas(x, w1, b1, w2, b2, *, tile_m=None, tile_h=None,
               compute_dtype=jnp.bfloat16, approximate_gelu=False,
               vmem_limit_bytes=None):
    """x: (..., in_features) -> (..., out_features).  jit-friendly.

    Weights are pre-transposed relative to PyTorch:
      w1: (in_features, hidden), w2: (hidden, out_features).
    """
    in_features = x.shape[-1]
    hidden = w1.shape[-1]
    out_features = w2.shape[-1]
    assert w1.shape == (in_features, hidden)
    assert w2.shape == (hidden, out_features)
    assert b1.shape[-1] == hidden and b2.shape[-1] == out_features
    # Perf note: feature dims that are multiples of 128 (especially
    # out_features) keep all loads/stores lane-dense (unmasked vst); other
    # sizes remain correct but slower.

    tune = _tpu_tuning()
    if tile_m is None:
        tile_m = tune["tile_m"]
    if vmem_limit_bytes is None:
        vmem_limit_bytes = tune["vmem_limit_bytes"]
    if tile_h is None:
        tile_h = _pick_tile_h(hidden, tune["max_tile_h"])
    assert hidden % tile_h == 0, "tile_h must divide the hidden size"

    lead_shape = x.shape[:-1]
    m = math.prod(lead_shape) if lead_shape else 1
    out_dtype = x.dtype

    # Never use a token tile bigger than the (8-rounded) token count; keep it a
    # multiple of 8 (sublane).  No jnp.pad of the activations: the ragged last
    # M tile is handled by Pallas partial-block reads / masked writes.
    tile_m = min(tile_m, _round_up(m, 8))
    tile_m = max(8, tile_m - tile_m % 8)

    x2d = x.reshape(m, in_features)
    if x2d.dtype != compute_dtype:
        x2d = x2d.astype(compute_dtype)
    w1c = w1 if w1.dtype == compute_dtype else w1.astype(compute_dtype)
    w2c = w2 if w2.dtype == compute_dtype else w2.astype(compute_dtype)
    # Tiny f32 biases: tighter parity with the f32 torch reference for free.
    b1_2d = b1.reshape(1, hidden).astype(jnp.float32)
    b2_2d = b2.reshape(1, out_features).astype(jnp.float32)

    num_m_tiles = pl.cdiv(m, tile_m)
    num_h_tiles = hidden // tile_h
    grid = (num_m_tiles, num_h_tiles)

    kernel = functools.partial(_mlp_kernel, approximate_gelu=approximate_gelu)

    w_bytes = (w1c.size * w1c.dtype.itemsize + w2c.size * w2c.dtype.itemsize
               + b1_2d.size * 4 + b2_2d.size * 4)
    cost = pl.CostEstimate(
        flops=2 * m * hidden * (in_features + out_features),
        transcendentals=m * hidden,
        bytes_accessed=(x2d.size * x2d.dtype.itemsize
                        + num_m_tiles * w_bytes
                        + m * out_features * jnp.dtype(out_dtype).itemsize),
    )

    out2d = pl.pallas_call(
        kernel,
        out_shape=jax.ShapeDtypeStruct((m, out_features), out_dtype),
        grid_spec=pltpu.PrefetchScalarGridSpec(
            num_scalar_prefetch=0,
            grid=grid,
            in_specs=[
                # x tile is k-invariant -> Pallas does not re-DMA it across k.
                pl.BlockSpec((tile_m, in_features), lambda i, k: (i, 0)),
                # Weight / bias slices stream along the hidden axis: no full
                # VMEM residency requirement for any hidden size.
                pl.BlockSpec((in_features, tile_h), lambda i, k: (0, k)),
                pl.BlockSpec((1, tile_h), lambda i, k: (0, k)),
                pl.BlockSpec((tile_h, out_features), lambda i, k: (k, 0)),
                pl.BlockSpec((1, out_features), lambda i, k: (0, 0)),
            ],
            out_specs=pl.BlockSpec((tile_m, out_features), lambda i, k: (i, 0)),
            scratch_shapes=[pltpu.VMEM((tile_m, out_features), jnp.float32)],
        ),
        compiler_params=pltpu.CompilerParams(
            dimension_semantics=("parallel", "arbitrary"),
            vmem_limit_bytes=vmem_limit_bytes,
        ),
        cost_estimate=cost,
    )(x2d, w1c, b1_2d, w2c, b2_2d)

    return out2d.reshape(*lead_shape, out_features)


def init_mlp_params(key, in_features, hidden_features=None, out_features=None,
                    dtype=jnp.bfloat16):
    """nn.Linear-style uniform init; weights already transposed for the kernel.

    Returns: w1 (in, hidden), b1 (hidden,), w2 (hidden, out), b2 (out,).
    """
    out_features = out_features or in_features
    hidden_features = hidden_features or in_features
    k1, k2, k3, k4 = jax.random.split(key, 4)

    bound1 = 1.0 / math.sqrt(in_features)
    bound2 = 1.0 / math.sqrt(hidden_features)
    w1 = jax.random.uniform(k1, (in_features, hidden_features),
                            minval=-bound1, maxval=bound1,
                            dtype=jnp.float32).astype(dtype)
    b1 = jax.random.uniform(k2, (hidden_features,),
                            minval=-bound1, maxval=bound1,
                            dtype=jnp.float32).astype(dtype)
    w2 = jax.random.uniform(k3, (hidden_features, out_features),
                            minval=-bound2, maxval=bound2,
                            dtype=jnp.float32).astype(dtype)
    b2 = jax.random.uniform(k4, (out_features,),
                            minval=-bound2, maxval=bound2,
                            dtype=jnp.float32).astype(dtype)
    return w1, b1, w2, b2


def mlp_reference(x, w1, b1, w2, b2):
    """Pure-JAX f32 reference for correctness checking (exact erf GELU)."""
    xf = x.astype(jnp.float32)
    h = xf @ w1.astype(jnp.float32) + b1.astype(jnp.float32)
    h = 0.5 * h * (1.0 + lax.erf(h / math.sqrt(2.0)))
    return h @ w2.astype(jnp.float32) + b2.astype(jnp.float32)


if __name__ == "__main__":
    key = jax.random.PRNGKey(0)
    kx, kp = jax.random.split(key)

    # Small transformer-like shapes with lane-dense feature dims.
    #   m = B*N = 400 is NOT a multiple of tile_m=256 -> exercises the ragged
    #   last M tile with no padding copy.
    #   hidden=512 with tile_h=256 -> exercises the hidden-axis accumulator
    #   split (2 K steps).
    B, N, C = 2, 200, 128
    hidden = 512
    x = jax.random.normal(kx, (B, N, C), dtype=jnp.float32).astype(jnp.bfloat16)
    w1, b1, w2, b2 = init_mlp_params(kp, C, hidden_features=hidden,
                                     out_features=C, dtype=jnp.bfloat16)

    fn = jax.jit(functools.partial(mlp_pallas, tile_m=256, tile_h=256))
    out = jax.block_until_ready(fn(x, w1, b1, w2, b2))

    ref = mlp_reference(x, w1, b1, w2, b2)
    assert out.shape == (B, N, C)
    # bf16 MXU operands + f32 accumulation + bf16 output: loose-ish tolerance
    # vs the f32 reference is expected and correct.
    assert jnp.allclose(out.astype(jnp.float32), ref, atol=3e-2, rtol=3e-2), \
        "mismatch vs reference"

    print("KERNEL_OK")
</pallas_src>

<mosaic_0001>
module attributes {stable_mosaic.version = 11 : i64} {
  func.func @_mlp_kernel(%arg0: i32, %arg1: i32, %arg2: memref<256x128xbf16, #tpu.memory_space<vmem>>, %arg3: memref<128x256xbf16, #tpu.memory_space<vmem>>, %arg4: memref<1x256xf32, #tpu.memory_space<vmem>>, %arg5: memref<256x128xbf16, #tpu.memory_space<vmem>>, %arg6: memref<1x128xf32, #tpu.memory_space<vmem>>, %arg7: memref<256x128xbf16, #tpu.memory_space<vmem>>, %arg8: memref<256x128xf32, #tpu.memory_space<vmem>>) attributes {dimension_semantics = [#tpu.dimension_semantics<parallel>, #tpu.dimension_semantics<arbitrary>], iteration_bounds = array<i64: 2, 2>, scalar_prefetch = 0 : i64, scratch_operands = 1 : i64, tpu.core_type = #tpu.core_type<tc>, window_params = [{transform_indices = @transform_0, window_bounds = array<i64: 256, 128>}, {transform_indices = @transform_1, window_bounds = array<i64: 128, 256>}, {transform_indices = @transform_2, window_bounds = array<i64: 1, 256>}, {transform_indices = @transform_3, window_bounds = array<i64: 256, 128>}, {pipeline_mode = #tpu.pipeline_mode<synchronous>, transform_indices = @transform_4, window_bounds = array<i64: 1, 128>}, {transform_indices = @transform_5, window_bounds = array<i64: 256, 128>}]} {
    %c0_i32 = arith.constant 0 : i32
    %0 = arith.cmpi eq, %arg1, %c0_i32 : i32
    %1 = arith.extui %0 : i1 to i32
    %c0_i32_0 = arith.constant 0 : i32
    %2 = arith.cmpi ne, %1, %c0_i32_0 : i32
    scf.if %2 {
      %cst_17 = arith.constant 0.000000e+00 : f32
      %26 = vector.broadcast %cst_17 : f32 to vector<256x128xf32>
      %c0_18 = arith.constant 0 : index
      %c0_19 = arith.constant 0 : index
      %27 = vector.load %arg8[%c0_18, %c0_19] : memref<256x128xf32, #tpu.memory_space<vmem>>, vector<256x128xf32>
      tpu.vector_store %arg8[%c0_18, %c0_19], %26 {strides = array<i32>} : memref<256x128xf32, #tpu.memory_space<vmem>>, vector<256x128xf32>,
    } else {
    }
    %c0 = arith.constant 0 : index
    %c0_1 = arith.constant 0 : index
    %3 = vector.load %arg2[%c0, %c0_1] : memref<256x128xbf16, #tpu.memory_space<vmem>>, vector<256x128xbf16>
    %c0_2 = arith.constant 0 : index
    %c0_3 = arith.constant 0 : index
    %4 = vector.load %arg3[%c0_2, %c0_3] : memref<128x256xbf16, #tpu.memory_space<vmem>>, vector<128x256xbf16>
    %cst = arith.constant dense<0.000000e+00> : vector<256x256xf32>
    %5 = tpu.matmul %3, %4, %cst {dimension_numbers = #tpu.dot_dimension_numbers<[1], [0], [0], [1], [0, 0, 1, 1], [], []>} : vector<256x128xbf16>, vector<128x256xbf16>, vector<256x256xf32> -> vector<256x256xf32>
    %c0_4 = arith.constant 0 : index
    %c0_5 = arith.constant 0 : index
    %6 = vector.load %arg4[%c0_4, %c0_5] : memref<1x256xf32, #tpu.memory_space<vmem>>, vector<1x256xf32>
    %7 = vector.broadcast %6 : vector<1x256xf32> to vector<256x256xf32>
    %8 = arith.addf %5, %7 : vector<256x256xf32>
    %cst_6 = arith.constant 5.000000e-01 : f32
    %9 = vector.broadcast %cst_6 : f32 to vector<256x256xf32>
    %10 = arith.mulf %9, %8 : vector<256x256xf32>
    %cst_7 = arith.constant 0.707106769 : f32
    %11 = vector.broadcast %cst_7 : f32 to vector<256x256xf32>
    %12 = arith.mulf %8, %11 : vector<256x256xf32>
    %13 = math.erf %12 : vector<256x256xf32>
    %cst_8 = arith.constant 1.000000e+00 : f32
    %14 = vector.broadcast %cst_8 : f32 to vector<256x256xf32>
    %15 = arith.addf %14, %13 : vector<256x256xf32>
    %16 = arith.mulf %10, %15 : vector<256x256xf32>
    %c0_9 = arith.constant 0 : index
    %c0_10 = arith.constant 0 : index
    %17 = vector.load %arg8[%c0_9, %c0_10] : memref<256x128xf32, #tpu.memory_space<vmem>>, vector<256x128xf32>
    %18 = arith.truncf %16 : vector<256x256xf32> to vector<256x256xbf16>
    %c0_11 = arith.constant 0 : index
    %c0_12 = arith.constant 0 : index
    %19 = vector.load %arg5[%c0_11, %c0_12] : memref<256x128xbf16, #tpu.memory_space<vmem>>, vector<256x128xbf16>
    %cst_13 = arith.constant dense<0.000000e+00> : vector<256x128xf32>
    %20 = tpu.matmul %18, %19, %cst_13 {dimension_numbers = #tpu.dot_dimension_numbers<[1], [0], [0], [1], [0, 0, 1, 1], [], []>} : vector<256x256xbf16>, vector<256x128xbf16>, vector<256x128xf32> -> vector<256x128xf32>
    %21 = arith.addf %17, %20 : vector<256x128xf32>
    %c0_14 = arith.constant 0 : index
    %c0_15 = arith.constant 0 : index
    %22 = vector.load %arg8[%c0_14, %c0_15] : memref<256x128xf32, #tpu.memory_space<vmem>>, vector<256x128xf32>
    tpu.vector_store %arg8[%c0_14, %c0_15], %21 {strides = array<i32>} : memref<256x128xf32, #tpu.memory_space<vmem>>, vector<256x128xf32>,
    %c1_i32 = arith.constant 1 : i32
    %23 = arith.cmpi eq, %arg1, %c1_i32 : i32
    %24 = arith.extui %23 : i1 to i32
    %c0_i32_16 = arith.constant 0 : i32
    %25 = arith.cmpi ne, %24, %c0_i32_16 : i32
    scf.if %25 {
      %c0_17 = arith.constant 0 : index
      %c0_18 = arith.constant 0 : index
      %26 = vector.load %arg8[%c0_17, %c0_18] : memref<256x128xf32, #tpu.memory_space<vmem>>, vector<256x128xf32>
      %c0_19 = arith.constant 0 : index
      %c0_20 = arith.constant 0 : index
      %27 = vector.load %arg6[%c0_19, %c0_20] : memref<1x128xf32, #tpu.memory_space<vmem>>, vector<1x128xf32>
      %28 = vector.broadcast %27 : vector<1x128xf32> to vector<256x128xf32>
      %29 = arith.addf %26, %28 : vector<256x128xf32>
      %30 = arith.truncf %29 : vector<256x128xf32> to vector<256x128xbf16>
      %c0_21 = arith.constant 0 : index
      %c0_22 = arith.constant 0 : index
      %31 = vector.load %arg7[%c0_21, %c0_22] : memref<256x128xbf16, #tpu.memory_space<vmem>>, vector<256x128xbf16>
      tpu.vector_store %arg7[%c0_21, %c0_22], %30 {strides = array<i32>} : memref<256x128xbf16, #tpu.memory_space<vmem>>, vector<256x128xbf16>,
    } else {
    }
    return
  }
  func.func @transform_0(%arg0: i32, %arg1: i32) -> (i32, i32) {
    %c0_i32 = arith.constant 0 : i32
    %c0_i32_0 = arith.constant 0 : i32
    return %arg0, %c0_i32 : i32, i32
  }
  func.func @transform_1(%arg0: i32, %arg1: i32) -> (i32, i32) {
    %c0_i32 = arith.constant 0 : i32
    %c0_i32_0 = arith.constant 0 : i32
    return %c0_i32, %arg1 : i32, i32
  }
  func.func @transform_2(%arg0: i32, %arg1: i32) -> (i32, i32) {
    %c0_i32 = arith.constant 0 : i32
    %c0_i32_0 = arith.constant 0 : i32
    return %c0_i32, %arg1 : i32, i32
  }
  func.func @transform_3(%arg0: i32, %arg1: i32) -> (i32, i32) {
    %c0_i32 = arith.constant 0 : i32
    %c0_i32_0 = arith.constant 0 : i32
    return %arg1, %c0_i32 : i32, i32
  }
  func.func @transform_4(%arg0: i32, %arg1: i32) -> (i32, i32) {
    %c0_i32 = arith.constant 0 : i32
    %c0_i32_0 = arith.constant 0 : i32
    %c0_i32_1 = arith.constant 0 : i32
    return %c0_i32, %c0_i32_0 : i32, i32
  }
  func.func @transform_5(%arg0: i32, %arg1: i32) -> (i32, i32) {
    %c0_i32 = arith.constant 0 : i32
    %c0_i32_0 = arith.constant 0 : i32
    return %arg0, %c0_i32 : i32, i32
  }
}

</mosaic_0001>

<llo_original>
// kernel: mlp_pallas.1
$region0: #{mlp_pallas.1}
  #allocation0 [shape = 'u32[]', space=smem, size = 0x4, offset = 0x4, fixed_abs, tag = 'smem constant byte address 0x4 - core index']
  #allocation1 [shape = 'u32[144,128]{1,0:T(1,128)}', space=vmem, size = 0x12000, scoped, tag = 'internal scratch']
  #allocation2 [shape = 'f32[256,128]{1,0:T(8,128)}', space=vmem, size = 0x20000, scoped, tag = 'scratch operand']
  %s0 = inlined_call_operand.hbm [shape: bf16[400,128], index: 0, kind: input, shape index: {}]
  %s1 = inlined_call_operand.hbm [shape: bf16[128,512], index: 1, kind: input, shape index: {}]
  %s2 = inlined_call_operand.vmem [shape: f32[1,512], index: 2, kind: input, shape index: {}]
  %s3 = inlined_call_operand.hbm [shape: bf16[512,128], index: 3, kind: input, shape index: {}]
  %s4 = inlined_call_operand.vmem [shape: f32[1,128], index: 4, kind: input, shape index: {}]
  %s5 = inlined_call_operand.hbm [shape: bf16[400,128], index: 5, kind: output, shape index: {}]
  %s6 = sld [smem:[#allocation0]]
  $region73: #{mlp_pallas.1} parent=0
    _
  %s8 = ssub.s32 1, %s6
  %s9 = scalar_select 0, %s8, %s6
  $region1: #{mlp_pallas.1} parent=0
    #allocation3 [shape = 'u8[131072]{0}', space=vmem, size = 0x20000, scoped, tag = 'input window, operand 0']
    #allocation4 [shape = 's32[2]{0}', space=sflag, size = 0x8, scoped, tag = 'scoped memory for mlp_pallas.1']
    #allocation5 [shape = 's32[2]{0}', space=sflag, size = 0x8, scoped, tag = 'scoped memory for mlp_pallas.1']
    #allocation6 [shape = 'u8[131072]{0}', space=vmem, size = 0x20000, scoped, tag = 'input window, operand 1']
    #allocation7 [shape = 's32[2]{0}', space=sflag, size = 0x8, scoped, tag = 'scoped memory for mlp_pallas.1']
    #allocation8 [shape = 'u8[131072]{0}', space=vmem, size = 0x20000, scoped, tag = 'input window, operand 3']
    #allocation9 [shape = 'u8[131072]{0}', space=vmem, size = 0x20000, scoped, tag = 'output window, operand 0']
    %10 = vsyncpa [#allocation4], 0
    %s11 = scalar_lea.sflag [#allocation4], 1
    %12 = vsyncpa %s11, 0
    %13 = vsyncpa [#allocation7], 0
    %s14 = scalar_lea.sflag [#allocation7], 1
    %15 = vsyncpa %s14, 0
    %16 = vsyncpa [#allocation5], 0
    %s17 = scalar_lea.sflag [#allocation5], 1
    %18 = vsyncpa %s17, 0
    loop: start=0, step=1, limit=6
    $region2: #{mlp_pallas.1} parent=1 // loop_pre_header
      _
    $region3: #{mlp_pallas.1} parent=1 // loop_header
      %s20 = sphi 0, %s24
      %p21 = scmp.ge.s32.totalorder %s20, 6
      %s27 = sphi 0, %s39
      %s28 = sphi 0, %s35
      %s29 = sphi 0, %s27
      %s30 = sphi 0, %s28
      %s31 = sphi 0, %s29
      %s32 = sphi 0, %s30
      %s42 = sphi 0, %s44
      %s45 = sphi 0, %s42
      %s46 = sphi 0, %s45
      %s62 = sphi 0, %s46
      %s68 = sphi 0, %s70
      %s71 = sphi 0, %s68
      %s72 = sphi 0, %s71
      %s88 = sphi 0, %s72
      %s94 = sphi 0, %s96
      %s97 = sphi 0, %s94
      %s98 = sphi 0, %s97
      %s114 = sphi 0, %s98
      %s120 = sphi 0, %s122
      %s123 = sphi 0, %s120
      %s124 = sphi 0, %s123
      %s140 = sphi 0, %s124
      %s144 = sphi 0, %s144
      %s146 = sphi 0, %s144
      %s147 = sphi 0, %s146
      %s161 = sphi 0, %s147
      %s167 = sphi 0, %s169
      %s170 = sphi 0, %s167
      %s171 = sphi 0, %s170
      %s187 = sphi 0, %s171
    $region4: #{mlp_pallas.1} parent=1 // loop_header_branch
      %23 = sbr.rel (%p21) target = $region8
    $region5: #{mlp_pallas.1} parent=1 // loop_body
      %s25 = ssub.s32 %s20, 1
      %s26 = ssub.s32 %s20, 2
      %s33 = sadd.s32 1, %s28
      %p34 = scmp.ge.s32.totalorder %s33, 2
      %s35 = scalar_select %p34, 0, %s33
      %s36 = sadd.s32 1, %s27
      %s37 = scalar_select %p34, %s36, %s27
      %p38 = scmp.ge.s32.totalorder %s37, 2
      %s39 = scalar_select %p38, 0, %s37
      %s40 = ssub.s32 %s27, %s39
      %p41 = scmp.eq.s32.totalorder %s40, 0
      %s43 = sadd.s32 %s42, 1
      %s44 = scalar_select %p41, %s42, %s43
      %p47 = pneg %p41
      %p48 = scmp.eq.s32.totalorder %s20, 3
      %p49 = por %p47, %p48
      %p50 = scmp.ne.s32.totalorder %s42, %s45
      %p51 = scmp.eq.s32.totalorder %s20, 0
      %p52 = por %p50, %p51
      %p53 = scmp.ne.s32.totalorder %s42, %s45
      %p54 = scmp.eq.s32.totalorder %s25, 3
      %p55 = por %p53, %p54
      %p56 = scmp.ne.s32.totalorder %s45, %s46
      %p57 = scmp.eq.s32.totalorder %s25, 0
      %p58 = por %p56, %p57
      %p59 = scmp.ne.s32.totalorder %s45, %s46
      %p60 = scmp.eq.s32.totalorder %s26, 3
      %p61 = por %p59, %p60
      %p63 = scmp.ne.s32.totalorder %s46, %s62
      %p64 = scmp.eq.s32.totalorder %s26, 0
      %p65 = por %p63, %p64
      %s66 = ssub.s32 %s28, %s35
      %p67 = scmp.eq.s32.totalorder %s66, 0
      %s69 = sadd.s32 %s68, 1
      %s70 = scalar_select %p67, %s68, %s69
      %p73 = pneg %p67
      %p74 = scmp.eq.s32.totalorder %s20, 3
      %p75 = por %p73, %p74
      %p76 = scmp.ne.s32.totalorder %s68, %s71
      %p77 = scmp.eq.s32.totalorder %s20, 0
      %p78 = por %p76, %p77
      %p79 = scmp.ne.s32.totalorder %s68, %s71
      %p80 = scmp.eq.s32.totalorder %s25, 3
      %p81 = por %p79, %p80
      %p82 = scmp.ne.s32.totalorder %s71, %s72
      %p83 = scmp.eq.s32.totalorder %s25, 0
      %p84 = por %p82, %p83
      %p85 = scmp.ne.s32.totalorder %s71, %s72
      %p86 = scmp.eq.s32.totalorder %s26, 3
      %p87 = por %p85, %p86
      %p89 = scmp.ne.s32.totalorder %s72, %s88
      %p90 = scmp.eq.s32.totalorder %s26, 0
      %p91 = por %p89, %p90
      %s92 = ssub.s32 %s28, %s35
      %p93 = scmp.eq.s32.totalorder %s92, 0
      %s95 = sadd.s32 %s94, 1
      %s96 = scalar_select %p93, %s94, %s95
      %p99 = pneg %p93
      %p100 = scmp.eq.s32.totalorder %s20, 3
      %p101 = por %p99, %p100
      %p102 = scmp.ne.s32.totalorder %s94, %s97
      %p103 = scmp.eq.s32.totalorder %s20, 0
      %p104 = por %p102, %p103
      %p105 = scmp.ne.s32.totalorder %s94, %s97
      %p106 = scmp.eq.s32.totalorder %s25, 3
      %p107 = por %p105, %p106
      %p108 = scmp.ne.s32.totalorder %s97, %s98
      %p109 = scmp.eq.s32.totalorder %s25, 0
      %p110 = por %p108, %p109
      %p111 = scmp.ne.s32.totalorder %s97, %s98
      %p112 = scmp.eq.s32.totalorder %s26, 3
      %p113 = por %p111, %p112
      %p115 = scmp.ne.s32.totalorder %s98, %s114
      %p116 = scmp.eq.s32.totalorder %s26, 0
      %p117 = por %p115, %p116
      %s118 = ssub.s32 %s28, %s35
      %p119 = scmp.eq.s32.totalorder %s118, 0
      %s121 = sadd.s32 %s120, 1
      %s122 = scalar_select %p119, %s120, %s121
      %p125 = pneg %p119
      %p126 = scmp.eq.s32.totalorder %s20, 3
      %p127 = por %p125, %p126
      %p128 = scmp.ne.s32.totalorder %s120, %s123
      %p129 = scmp.eq.s32.totalorder %s20, 0
      %p130 = por %p128, %p129
      %p131 = scmp.ne.s32.totalorder %s120, %s123
      %p132 = scmp.eq.s32.totalorder %s25, 3
      %p133 = por %p131, %p132
      %p134 = scmp.ne.s32.totalorder %s123, %s124
      %p135 = scmp.eq.s32.totalorder %s25, 0
      %p136 = por %p134, %p135
      %p137 = scmp.ne.s32.totalorder %s123, %s124
      %p138 = scmp.eq.s32.totalorder %s26, 3
      %p139 = por %p137, %p138
      %p141 = scmp.ne.s32.totalorder %s124, %s140
      %p142 = scmp.eq.s32.totalorder %s26, 0
      %p143 = por %p141, %p142
      %s145 = sadd.s32 %s144, 1
      %p148 = scmp.eq.s32.totalorder %s20, 3
      %p149 = scmp.ne.s32.totalorder %s144, %s146
      %p150 = scmp.eq.s32.totalorder %s20, 0
      %p151 = por %p149, %p150
      %p152 = scmp.ne.s32.totalorder %s144, %s146
      %p153 = scmp.eq.s32.totalorder %s25, 3
      %p154 = por %p152, %p153
      %p155 = scmp.ne.s32.totalorder %s146, %s147
      %p156 = scmp.eq.s32.totalorder %s25, 0
      %p157 = por %p155, %p156
      %p158 = scmp.ne.s32.totalorder %s146, %s147
      %p159 = scmp.eq.s32.totalorder %s26, 3
      %p160 = por %p158, %p159
      %p162 = scmp.ne.s32.totalorder %s147, %s161
      %p163 = scmp.eq.s32.totalorder %s26, 0
      %p164 = por %p162, %p163
      %s165 = ssub.s32 %s27, %s39
      %p166 = scmp.eq.s32.totalorder %s165, 0
      %s168 = sadd.s32 %s167, 1
      %s169 = scalar_select %p166, %s167, %s168
      %p172 = pneg %p166
      %p173 = scmp.eq.s32.totalorder %s20, 3
      %p174 = por %p172, %p173
      %p175 = scmp.ne.s32.totalorder %s167, %s170
      %p176 = scmp.eq.s32.totalorder %s20, 0
      %p177 = por %p175, %p176
      %p178 = scmp.ne.s32.totalorder %s167, %s170
      %p179 = scmp.eq.s32.totalorder %s25, 3
      %p180 = por %p178, %p179
      %p181 = scmp.ne.s32.totalorder %s170, %s171
      %p182 = scmp.eq.s32.totalorder %s25, 0
      %p183 = por %p181, %p182
      %p184 = scmp.ne.s32.totalorder %s170, %s171
      %p185 = scmp.eq.s32.totalorder %s26, 3
      %p186 = por %p184, %p185
      %p188 = scmp.ne.s32.totalorder %s171, %s187
      %p189 = scmp.eq.s32.totalorder %s26, 0
      %p190 = por %p188, %p189
      %p191 = scmp.le.s32.totalorder 1, %s20
      %p192 = scmp.lt.s32.totalorder %s20, 5
      %p193 = pnand %p191, %p192
      %p194 = pneg %p193
      // Predicated region
      $region9: #{mlp_pallas.1} parent=5 // pred_check
        _
      $region10: #{mlp_pallas.1} parent=5 // pred_check_branch
        %196 = sbr.rel (%p193) target = $region12
      $region11: #{mlp_pallas.1} parent=5 // pred_region
        %s197 = ssub.s32 %s20, 1
        // Predicated region
        $region13: #{mlp_pallas.1} parent=11 // pred_check
          %p198 = pneg %p157
        $region14: #{mlp_pallas.1} parent=11 // pred_check_branch
          %200 = sbr.rel (%p198) target = $region16
        $region15: #{mlp_pallas.1} parent=11 // pred_region
          _
        $region16: #{mlp_pallas.1} parent=11 // pred_fallthru
          _
      $region12: #{mlp_pallas.1} parent=5 // pred_fallthru
        _
      %p201 = scmp.lt.s32.totalorder %s20, 4
      // Predicated region
      $region17: #{mlp_pallas.1} parent=5 // pred_check
        %p202 = pneg %p201
      $region18: #{mlp_pallas.1} parent=5 // pred_check_branch
        %204 = sbr.rel (%p202) target = $region20
      $region19: #{mlp_pallas.1} parent=5 // pred_region
        // Predicated region
        $region21: #{mlp_pallas.1} parent=19 // pred_check
          %p205 = pneg %p52
        $region22: #{mlp_pallas.1} parent=19 // pred_check_branch
          %207 = sbr.rel (%p205) target = $region24
        $region23: #{mlp_pallas.1} parent=19 // pred_region
          %s208 = sand.u32 %s42, 1
          %s209 = scalar_lea.sflag [#allocation4], %s208
          %s210 = sand.u32 %s42, 1
          %s211 = smul.addr %s210, 128
          %s212 = scalar_lea.vmem [#allocation3], %s211
          %s213 = smul.u32 32, %s27
          %s214 = ssub.s32 50, %s213
          %p215 = scmp.lt.s32.totalorder %s214, 32
          %s216 = scalar_select %p215, %s214, 32
          %s217 = smul.u32 64, %s216
          %s219 = ssub.s32 2048, %s217
          %220 = vsyncadd %s209, %s219
          %p221 = scmp.ne.s32.totalorder 0, %s217
          %s222 = smul.addr %s213, 64
          %s223 = scalar_lea.hbm %s0, %s222
          %s224 = smul.u32 4, %s216
          %s225 = sshll.u32 %s212, 4
          %s226 = int_to_ptr.vmem [resolvable:$true] %s225
          %s227 = sshll.u32 %s224, 4
          %231 = dma.hbm_to_vmem [thread:$0]  (%p221), %s223, %s227, %s226, %s209, 64, 64, 4
        $region24: #{mlp_pallas.1} parent=19 // pred_fallthru
          _
        // Predicated region
        $region25: #{mlp_pallas.1} parent=19 // pred_check
          %p232 = pneg %p78
        $region26: #{mlp_pallas.1} parent=19 // pred_check_branch
          %234 = sbr.rel (%p232) target = $region28
        $region27: #{mlp_pallas.1} parent=19 // pred_region
          %s235 = sand.u32 %s20, 1
          %s236 = scalar_lea.sflag [#allocation7], %s235
          %s237 = sand.u32 %s68, 1
          %s238 = smul.addr %s237, 128
          %s239 = scalar_lea.vmem [#allocation6], %s238
          %s240 = smul.u32 2, %s28
          %s242 = ssub.s32 2048, 2048
          %243 = vsyncadd %s236, %s242
          %s244 = smul.addr %s240, 64
          %s245 = scalar_lea.hbm %s1, %s244
          %s246 = sshll.u32 %s239, 4
          %s247 = int_to_ptr.vmem [resolvable:$true] %s246
          %252 = dma.hbm_to_vmem [thread:$0]  %s245, 2048, %s247, %s236, 256, 128, 8
        $region28: #{mlp_pallas.1} parent=19 // pred_fallthru
          _
        // Predicated region
        $region29: #{mlp_pallas.1} parent=19 // pred_check
          %p253 = pneg %p104
        $region30: #{mlp_pallas.1} parent=19 // pred_check_branch
          %255 = sbr.rel (%p253) target = $region32
        $region31: #{mlp_pallas.1} parent=19 // pred_region
          %s256 = smul.u32 2, %s28
          %p257 = scmp.lt.s32.totalorder %s256, 3
          %s258 = scalar_select %p257, %s256, 3
          %s259 = scalar_lea.vmem %s2, %s258
          %s260 = smul.u32 2, %s28
        $region32: #{mlp_pallas.1} parent=19 // pred_fallthru
          _
        // Predicated region
        $region33: #{mlp_pallas.1} parent=19 // pred_check
          %p261 = pneg %p130
        $region34: #{mlp_pallas.1} parent=19 // pred_check_branch
          %263 = sbr.rel (%p261) target = $region36
        $region35: #{mlp_pallas.1} parent=19 // pred_region
          %s264 = sand.u32 %s20, 1
          %s265 = scalar_lea.sflag [#allocation7], %s264
          %s266 = sand.u32 %s120, 1
          %s267 = smul.addr %s266, 128
          %s268 = scalar_lea.vmem [#allocation8], %s267
          %s269 = smul.u32 32, %s28
          %s271 = ssub.s32 2048, 2048
          %272 = vsyncadd %s265, %s271
          %s273 = smul.addr %s269, 64
          %s274 = scalar_lea.hbm %s3, %s273
          %s275 = sshll.u32 %s268, 4
          %s276 = int_to_ptr.vmem [resolvable:$true] %s275
          %281 = dma.hbm_to_vmem [thread:$0]  %s274, 2048, %s276, %s265, 64, 64, 4
        $region36: #{mlp_pallas.1} parent=19 // pred_fallthru
          _
      $region20: #{mlp_pallas.1} parent=5 // pred_fallthru
        _
      %p282 = scmp.le.s32.totalorder 1, %s20
      %p283 = scmp.lt.s32.totalorder %s20, 5
      %p284 = pnand %p282, %p283
      %p285 = pneg %p284
      // Predicated region
      $region37: #{mlp_pallas.1} parent=5 // pred_check
        _
      $region38: #{mlp_pallas.1} parent=5 // pred_check_branch
        %287 = sbr.rel (%p284) target = $region40
      $region39: #{mlp_pallas.1} parent=5 // pred_region
        %s288 = ssub.s32 %s20, 1
        %s289 = sand.u32 %s45, 1
        %s290 = scalar_lea.sflag [#allocation4], %s289
        %s291 = sand.u32 %s45, 1
        %s292 = smul.addr %s291, 128
        %s293 = scalar_lea.vmem [#allocation3], %s292
        // Predicated region
        $region41: #{mlp_pallas.1} parent=39 // pred_check
          %p294 = pneg %p58
        $region42: #{mlp_pallas.1} parent=39 // pred_check_branch
          %296 = sbr.rel (%p294) target = $region44
        $region43: #{mlp_pallas.1} parent=39 // pred_region
          %297 = dma.done %s290, 2048
        $region44: #{mlp_pallas.1} parent=39 // pred_fallthru
          _
        %s298 = sand.u32 %s25, 1
        %s299 = scalar_lea.sflag [#allocation7], %s298
        %s300 = sand.u32 %s71, 1
        %s301 = smul.addr %s300, 128
        %s302 = scalar_lea.vmem [#allocation6], %s301
        // Predicated region
        $region45: #{mlp_pallas.1} parent=39 // pred_check
          %p303 = pneg %p84
        $region46: #{mlp_pallas.1} parent=39 // pred_check_branch
          %305 = sbr.rel (%p303) target = $region48
        $region47: #{mlp_pallas.1} parent=39 // pred_region
          %306 = dma.done %s299, 2048
        $region48: #{mlp_pallas.1} parent=39 // pred_fallthru
          _
        %s307 = sand.u32 %s25, 1
        %s308 = scalar_lea.sflag [#allocation7], %s307
        %s309 = sand.u32 %s123, 1
        %s310 = smul.addr %s309, 128
        %s311 = scalar_lea.vmem [#allocation8], %s310
        // Predicated region
        $region49: #{mlp_pallas.1} parent=39 // pred_check
          %p312 = pneg %p136
        $region50: #{mlp_pallas.1} parent=39 // pred_check_branch
          %314 = sbr.rel (%p312) target = $region52
        $region51: #{mlp_pallas.1} parent=39 // pred_region
          %315 = dma.done %s308, 2048
        $region52: #{mlp_pallas.1} parent=39 // pred_fallthru
          _
        %s316 = sand.u32 %s45, 1
        %s317 = scalar_lea.sflag [#allocation4], %s316
        %s318 = sand.u32 %s45, 1
        %s319 = smul.addr %s318, 128
        %s320 = scalar_lea.vmem [#allocation3], %s319
        %p321 = pneg %p58
        %p322 = pneg %p55
        %s323 = sand.u32 %s25, 1
        %s324 = scalar_lea.sflag [#allocation7], %s323
        %s325 = sand.u32 %s71, 1
        %s326 = smul.addr %s325, 128
        %s327 = scalar_lea.vmem [#allocation6], %s326
        %p328 = pneg %p84
        %p329 = pneg %p81
        %s330 = smul.u32 2, %s30
        %p331 = scmp.lt.s32.totalorder %s330, 3
        %s332 = scalar_select %p331, %s330, 3
        %s333 = scalar_lea.vmem %s2, %s332
        %p334 = pneg %p110
        %p335 = pneg %p107
        %s336 = sand.u32 %s25, 1
        %s337 = scalar_lea.sflag [#allocation7], %s336
        %s338 = sand.u32 %s123, 1
        %s339 = smul.addr %s338, 128
        %s340 = scalar_lea.vmem [#allocation8], %s339
        %p341 = pneg %p136
        %p342 = pneg %p133
        %p343 = pneg %p157
        %p344 = pneg %p154
        %p345 = pneg %p183
        %p346 = pneg %p180
        %s347 = sand.u32 %s170, 1
        %s348 = scalar_lea.sflag [#allocation5], %s347
        %s349 = sand.u32 %s170, 1
        %s350 = smul.addr %s349, 128
        %s351 = scalar_lea.vmem [#allocation9], %s350
        %s352 = smul.u32 32, %s29
        %s353 = ssub.s32 50, %s352
        %p354 = scmp.lt.s32.totalorder %s353, 32
        %s355 = scalar_select %p354, %s353, 32
        %s356 = smul.u32 64, %s355
        %s357 = smul.u32 2, %s30
        %s358 = smul.u32 2, %s30
        %p359 = scmp.lt.s32.totalorder %s358, 3
        %s360 = scalar_select %p359, %s358, 3
        %s361 = scalar_lea.vmem %s2, %s360
        %s362 = smul.u32 2, %s30
        %s363 = smul.u32 32, %s30
        %s364 = smul.u32 32, %s29
        %s365 = ssub.s32 50, %s364
        %p366 = scmp.lt.s32.totalorder %s365, 32
        %s367 = scalar_select %p366, %s365, 32
        %s368 = smul.u32 64, %s367
        %p370 = scmp.eq.s32.totalorder %s30, 0
        // Predicated region
        $region53: #{mlp_pallas.1} parent=39 // pred_check
          %p371 = pneg %p370
        $region54: #{mlp_pallas.1} parent=39 // pred_check_branch
          %373 = sbr.rel (%p371) target = $region56
        $region55: #{mlp_pallas.1} parent=39 // pred_region
          %374 = vst [vmem:[#allocation2] sm:$0xff] 0.0
          %375 = vst [vmem:[#allocation2 + $0x8] sm:$0xff] 0.0
          %376 = vst [vmem:[#allocation2 + $0x10] sm:$0xff] 0.0
          %377 = vst [vmem:[#allocation2 + $0x18] sm:$0xff] 0.0
          %378 = vst [vmem:[#allocation2 + $0x20] sm:$0xff] 0.0
          %379 = vst [vmem:[#allocation2 + $0x28] sm:$0xff] 0.0
          %380 = vst [vmem:[#allocation2 + $0x30] sm:$0xff] 0.0
          %381 = vst [vmem:[#allocation2 + $0x38] sm:$0xff] 0.0
          %382 = vst [vmem:[#allocation2 + $0x40] sm:$0xff] 0.0
          %383 = vst [vmem:[#allocation2 + $0x48] sm:$0xff] 0.0
          %384 = vst [vmem:[#allocation2 + $0x50] sm:$0xff] 0.0
          %385 = vst [vmem:[#allocation2 + $0x58] sm:$0xff] 0.0
          %386 = vst [vmem:[#allocation2 + $0x60] sm:$0xff] 0.0
          %387 = vst [vmem:[#allocation2 + $0x68] sm:$0xff] 0.0
          %388 = vst [vmem:[#allocation2 + $0x70] sm:$0xff] 0.0
          %389 = vst [vmem:[#allocation2 + $0x78] sm:$0xff] 0.0
          %390 = vst [vmem:[#allocation2 + $0x80] sm:$0xff] 0.0
          %391 = vst [vmem:[#allocation2 + $0x88] sm:$0xff] 0.0
          %392 = vst [vmem:[#allocation2 + $0x90] sm:$0xff] 0.0
          %393 = vst [vmem:[#allocation2 + $0x98] sm:$0xff] 0.0
          %394 = vst [vmem:[#allocation2 + $0xa0] sm:$0xff] 0.0
          %395 = vst [vmem:[#allocation2 + $0xa8] sm:$0xff] 0.0
          %396 = vst [vmem:[#allocation2 + $0xb0] sm:$0xff] 0.0
          %397 = vst [vmem:[#allocation2 + $0xb8] sm:$0xff] 0.0
          %398 = vst [vmem:[#allocation2 + $0xc0] sm:$0xff] 0.0
          %399 = vst [vmem:[#allocation2 + $0xc8] sm:$0xff] 0.0
          %400 = vst [vmem:[#allocation2 + $0xd0] sm:$0xff] 0.0
          %401 = vst [vmem:[#allocation2 + $0xd8] sm:$0xff] 0.0
          %402 = vst [vmem:[#allocation2 + $0xe0] sm:$0xff] 0.0
          %403 = vst [vmem:[#allocation2 + $0xe8] sm:$0xff] 0.0
          %404 = vst [vmem:[#allocation2 + $0xf0] sm:$0xff] 0.0
          %405 = vst [vmem:[#allocation2 + $0xf8] sm:$0xff] 0.0
        $region56: #{mlp_pallas.1} parent=39 // pred_fallthru
          _
        %v406 = vld [vmem:[%s293] sm:$0xf]
        %v407 = vld [vmem:[%s293 + $0x4] sm:$0xf]
        %v408 = vld [vmem:[%s293 + $0x8] sm:$0xf]
        %v409 = vld [vmem:[%s293 + $0xc] sm:$0xf]
        %v410 = vld [vmem:[%s293 + $0x10] sm:$0xf]
        %v411 = vld [vmem:[%s293 + $0x14] sm:$0xf]
        %v412 = vld [vmem:[%s293 + $0x18] sm:$0xf]
        %v413 = vld [vmem:[%s293 + $0x1c] sm:$0xf]
        %v414 = vld [vmem:[%s293 + $0x20] sm:$0xf]
        %v415 = vld [vmem:[%s293 + $0x24] sm:$0xf]
        %v416 = vld [vmem:[%s293 + $0x28] sm:$0xf]
        %v417 = vld [vmem:[%s293 + $0x2c] sm:$0xf]
        %v418 = vld [vmem:[%s293 + $0x30] sm:$0xf]
        %v419 = vld [vmem:[%s293 + $0x34] sm:$0xf]
        %v420 = vld [vmem:[%s293 + $0x38] sm:$0xf]
        %v421 = vld [vmem:[%s293 + $0x3c] sm:$0xf]
        %v422 = vld [vmem:[%s293 + $0x40] sm:$0xf]
        %v423 = vld [vmem:[%s293 + $0x44] sm:$0xf]
        %v424 = vld [vmem:[%s293 + $0x48] sm:$0xf]
        %v425 = vld [vmem:[%s293 + $0x4c] sm:$0xf]
        %v426 = vld [vmem:[%s293 + $0x50] sm:$0xf]
        %v427 = vld [vmem:[%s293 + $0x54] sm:$0xf]
        %v428 = vld [vmem:[%s293 + $0x58] sm:$0xf]
        %v429 = vld [vmem:[%s293 + $0x5c] sm:$0xf]
        %v430 = vld [vmem:[%s293 + $0x60] sm:$0xf]
        %v431 = vld [vmem:[%s293 + $0x64] sm:$0xf]
        %v432 = vld [vmem:[%s293 + $0x68] sm:$0xf]
        %v433 = vld [vmem:[%s293 + $0x6c] sm:$0xf]
        %v434 = vld [vmem:[%s293 + $0x70] sm:$0xf]
        %v435 = vld [vmem:[%s293 + $0x74] sm:$0xf]
        %v436 = vld [vmem:[%s293 + $0x78] sm:$0xf]
        %v437 = vld [vmem:[%s293 + $0x7c] sm:$0xf]
        %v438 = vld [vmem:[%s302] sm:$0xff]
        %v439 = vld [vmem:[%s302 + $0x8] sm:$0xff]
        %v440 = vld [vmem:[%s302 + $0x10] sm:$0xff]
        %v441 = vld [vmem:[%s302 + $0x18] sm:$0xff]
        %v442 = vld [vmem:[%s302 + $0x20] sm:$0xff]
        %v443 = vld [vmem:[%s302 + $0x28] sm:$0xff]
        %v444 = vld [vmem:[%s302 + $0x30] sm:$0xff]
        %v445 = vld [vmem:[%s302 + $0x38] sm:$0xff]
        %v446 = vld [vmem:[%s302 + $0x40] sm:$0xff]
        %v447 = vld [vmem:[%s302 + $0x48] sm:$0xff]
        %v448 = vld [vmem:[%s302 + $0x50] sm:$0xff]
        %v449 = vld [vmem:[%s302 + $0x58] sm:$0xff]
        %v450 = vld [vmem:[%s302 + $0x60] sm:$0xff]
        %v451 = vld [vmem:[%s302 + $0x68] sm:$0xff]
        %v452 = vld [vmem:[%s302 + $0x70] sm:$0xff]
        %v453 = vld [vmem:[%s302 + $0x78] sm:$0xff]
        %v454 = vld [vmem:[%s361] sm:$0x3]
        %v456 = vlaneseq
        %v457 = vshrl.u32 %v456, 7
        %v458 = vsub.s32 0, %v457
        %v459 = vrot.slane %v454, %v458
        %v460 = vlaneseq
        %v461 = vshrl.u32 %v460, 7
        %v462 = vsub.s32 1, %v461
        %v463 = vrot.slane %v454, %v462
        %v498 = vunpack.c.l.b16 %v406
        %v499 = vunpack.c.l.b16 %v407
        %v500 = vunpack.c.l.b16 %v408
        %v501 = vunpack.c.l.b16 %v409
        %v502 = vunpack.c.l.b16 %v410
        %v503 = vunpack.c.l.b16 %v411
        %v504 = vunpack.c.l.b16 %v412
        %v505 = vunpack.c.l.b16 %v413
        %v506 = vunpack.c.l.b16 %v414
        %v507 = vunpack.c.l.b16 %v415
        %v508 = vunpack.c.l.b16 %v416
        %v509 = vunpack.c.l.b16 %v417
        %v510 = vunpack.c.l.b16 %v418
        %v511 = vunpack.c.l.b16 %v419
        %v512 = vunpack.c.l.b16 %v420
        %v513 = vunpack.c.l.b16 %v421
        %v514 = vunpack.c.l.b16 %v422
        %v515 = vunpack.c.l.b16 %v423
        %v516 = vunpack.c.l.b16 %v424
        %v517 = vunpack.c.l.b16 %v425
        %v518 = vunpack.c.l.b16 %v426
        %v519 = vunpack.c.l.b16 %v427
        %v520 = vunpack.c.l.b16 %v428
        %v521 = vunpack.c.l.b16 %v429
        %v522 = vunpack.c.l.b16 %v430
        %v523 = vunpack.c.l.b16 %v431
        %v524 = vunpack.c.l.b16 %v432
        %v525 = vunpack.c.l.b16 %v433
        %v526 = vunpack.c.l.b16 %v434
        %v527 = vunpack.c.l.b16 %v435
        %v528 = vunpack.c.l.b16 %v436
        %v529 = vunpack.c.l.b16 %v437
        %v530 = vpack.c.b16 %v499, %v498
        %v531 = vpack.c.b16 %v501, %v500
        %v532 = vpack.c.b16 %v503, %v502
        %v533 = vpack.c.b16 %v505, %v504
        %v534 = vpack.c.b16 %v507, %v506
        %v535 = vpack.c.b16 %v509, %v508
        %v536 = vpack.c.b16 %v511, %v510
        %v537 = vpack.c.b16 %v513, %v512
        %v538 = vpack.c.b16 %v515, %v514
        %v539 = vpack.c.b16 %v517, %v516
        %v540 = vpack.c.b16 %v519, %v518
        %v541 = vpack.c.b16 %v521, %v520
        %v542 = vpack.c.b16 %v523, %v522
        %v543 = vpack.c.b16 %v525, %v524
        %v544 = vpack.c.b16 %v527, %v526
        %v545 = vpack.c.b16 %v529, %v528
        %v578 = vunpack.c.l.b16 %v438
        %v579 = vunpack.c.h.b16 %v438
        %v580 = vunpack.c.l.b16 %v439
        %v581 = vunpack.c.h.b16 %v439
        %v582 = vunpack.c.l.b16 %v440
        %v583 = vunpack.c.h.b16 %v440
        %v584 = vunpack.c.l.b16 %v441
        %v585 = vunpack.c.h.b16 %v441
        %v586 = vunpack.c.l.b16 %v442
        %v587 = vunpack.c.h.b16 %v442
        %v588 = vunpack.c.l.b16 %v443
        %v589 = vunpack.c.h.b16 %v443
        %v590 = vunpack.c.l.b16 %v444
        %v591 = vunpack.c.h.b16 %v444
        %v592 = vunpack.c.l.b16 %v445
        %v593 = vunpack.c.h.b16 %v445
        %v594 = vunpack.c.l.b16 %v446
        %v595 = vunpack.c.h.b16 %v446
        %v596 = vunpack.c.l.b16 %v447
        %v597 = vunpack.c.h.b16 %v447
        %v598 = vunpack.c.l.b16 %v448
        %v599 = vunpack.c.h.b16 %v448
        %v600 = vunpack.c.l.b16 %v449
        %v601 = vunpack.c.h.b16 %v449
        %v602 = vunpack.c.l.b16 %v450
        %v603 = vunpack.c.h.b16 %v450
        %v604 = vunpack.c.l.b16 %v451
        %v605 = vunpack.c.h.b16 %v451
        %v606 = vunpack.c.l.b16 %v452
        %v607 = vunpack.c.h.b16 %v452
        %v608 = vunpack.c.l.b16 %v453
        %v609 = vunpack.c.h.b16 %v453
        %v610 = vpack.c.b16 %v580, %v578
        %v611 = vpack.c.b16 %v581, %v579
        %v612 = vpack.c.b16 %v584, %v582
        %v613 = vpack.c.b16 %v585, %v583
        %v614 = vpack.c.b16 %v588, %v586
        %v615 = vpack.c.b16 %v589, %v587
        %v616 = vpack.c.b16 %v592, %v590
        %v617 = vpack.c.b16 %v593, %v591
        %v618 = vpack.c.b16 %v596, %v594
        %v619 = vpack.c.b16 %v597, %v595
        %v620 = vpack.c.b16 %v600, %v598
        %v621 = vpack.c.b16 %v601, %v599
        %v622 = vpack.c.b16 %v604, %v602
        %v623 = vpack.c.b16 %v605, %v603
        %v624 = vpack.c.b16 %v608, %v606
        %v625 = vpack.c.b16 %v609, %v607
        %642 = vmatprep.subr.bf16.mxu0 %v611
        %643 = vmatpush1.bf16.msra.mxu0 %v610
        %644 = vmatprep.subr.bf16.mxu0 %v613
        %645 = vmatpush1.bf16.msra.mxu0 %v612
        %646 = vmatprep.subr.bf16.mxu0 %v615
        %647 = vmatpush1.bf16.msra.mxu0 %v614
        %648 = vmatprep.subr.bf16.mxu0 %v617
        %649 = vmatpush1.bf16.msra.mxu0 %v616
        %650 = vmatprep.subr.bf16.mxu0 %v619
        %651 = vmatpush1.bf16.msra.mxu0 %v618
        %652 = vmatprep.subr.bf16.mxu0 %v621
        %653 = vmatpush1.bf16.msra.mxu0 %v620
        %654 = vmatprep.subr.bf16.mxu0 %v623
        %655 = vmatpush1.bf16.msra.mxu0 %v622
        %656 = vmatprep.subr.bf16.mxu0 %v625
        %657 = vmatpush1.bf16.msra.mxu0 %v624
        %658 = vmatprep.subr.bf16.mxu0 0
        %659 = vmatpush1.bf16.msra.mxu0 0
        %660 = vmatprep.subr.bf16.mxu0 0
        %661 = vmatpush1.bf16.msra.mxu0 0
        %662 = vmatprep.subr.bf16.mxu0 0
        %663 = vmatpush1.bf16.msra.mxu0 0
        %664 = vmatprep.subr.bf16.mxu0 0
        %665 = vmatpush1.bf16.msra.mxu0 0
        %666 = vmatprep.subr.bf16.mxu0 0
        %667 = vmatpush1.bf16.msra.mxu0 0
        %668 = vmatprep.subr.bf16.mxu0 0
        %669 = vmatpush1.bf16.msra.mxu0 0
        %670 = vmatprep.subr.bf16.mxu0 0
        %671 = vmatpush1.bf16.msra.mxu0 0
        %672 = vmatprep.subr.bf16.mxu0 0
        %673 = vmatpush1.bf16.msra.mxu0 0
        %674 = vmatprep.mubr.bf16.mxu0 0
        %675 = vmatmul.mubr.bf16.gmra.mrb[0].mxu0 %v530
        %v676 = vpop.f32.mrb[0].mxu0
        %v677 = vadd.f32 %v459, %v676
        %v678 = vpop.f32.mrb[0].mxu0
        %v679 = vadd.f32 %v463, %v678
        %v680 = vpop.f32.mrb[0].mxu0
        %v681 = vadd.f32 %v459, %v680
        %v682 = vpop.f32.mrb[0].mxu0
        %v683 = vadd.f32 %v463, %v682
        %684 = vmatprep.mubr.bf16.mxu0 0
        %685 = vmatmul.mubr.bf16.gmra.mrb[0].mxu0 %v531
        %v686 = vpop.f32.mrb[0].mxu0
        %v687 = vadd.f32 %v459, %v686
        %v688 = vpop.f32.mrb[0].mxu0
        %v689 = vadd.f32 %v463, %v688
        %v690 = vpop.f32.mrb[0].mxu0
        %v691 = vadd.f32 %v459, %v690
        %v692 = vpop.f32.mrb[0].mxu0
        %v693 = vadd.f32 %v463, %v692
        %694 = vmatprep.mubr.bf16.mxu0 0
        %695 = vmatmul.mubr.bf16.gmra.mrb[0].mxu0 %v532
        %v696 = vpop.f32.mrb[0].mxu0
        %v697 = vadd.f32 %v459, %v696
        %v698 = vpop.f32.mrb[0].mxu0
        %v699 = vadd.f32 %v463, %v698
        %v700 = vpop.f32.mrb[0].mxu0
        %v701 = vadd.f32 %v459, %v700
        %v702 = vpop.f32.mrb[0].mxu0
        %v703 = vadd.f32 %v463, %v702
        %704 = vmatprep.mubr.bf16.mxu0 0
        %705 = vmatmul.mubr.bf16.gmra.mrb[0].mxu0 %v533
        %v706 = vpop.f32.mrb[0].mxu0
        %v707 = vadd.f32 %v459, %v706
        %v708 = vpop.f32.mrb[0].mxu0
        %v709 = vadd.f32 %v463, %v708
        %v710 = vpop.f32.mrb[0].mxu0
        %v711 = vadd.f32 %v459, %v710
        %v712 = vpop.f32.mrb[0].mxu0
        %v713 = vadd.f32 %v463, %v712
        %714 = vmatprep.mubr.bf16.mxu0 0
        %715 = vmatmul.mubr.bf16.gmra.mrb[0].mxu0 %v534
        %v716 = vpop.f32.mrb[0].mxu0
        %v717 = vadd.f32 %v459, %v716
        %v718 = vpop.f32.mrb[0].mxu0
        %v719 = vadd.f32 %v463, %v718
        %v720 = vpop.f32.mrb[0].mxu0
        %v721 = vadd.f32 %v459, %v720
        %v722 = vpop.f32.mrb[0].mxu0
        %v723 = vadd.f32 %v463, %v722
        %724 = vmatprep.mubr.bf16.mxu0 0
        %725 = vmatmul.mubr.bf16.gmra.mrb[0].mxu0 %v535
        %v726 = vpop.f32.mrb[0].mxu0
        %v727 = vadd.f32 %v459, %v726
        %v728 = vpop.f32.mrb[0].mxu0
        %v729 = vadd.f32 %v463, %v728
        %v730 = vpop.f32.mrb[0].mxu0
        %v731 = vadd.f32 %v459, %v730
        %v732 = vpop.f32.mrb[0].mxu0
        %v733 = vadd.f32 %v463, %v732
        %734 = vmatprep.mubr.bf16.mxu0 0
        %735 = vmatmul.mubr.bf16.gmra.mrb[0].mxu0 %v536
        %v736 = vpop.f32.mrb[0].mxu0
        %v737 = vadd.f32 %v459, %v736
        %v738 = vpop.f32.mrb[0].mxu0
        %v739 = vadd.f32 %v463, %v738
        %v740 = vpop.f32.mrb[0].mxu0
        %v741 = vadd.f32 %v459, %v740
        %v742 = vpop.f32.mrb[0].mxu0
        %v743 = vadd.f32 %v463, %v742
        %744 = vmatprep.mubr.bf16.mxu0 0
        %745 = vmatmul.mubr.bf16.gmra.mrb[0].mxu0 %v537
        %v746 = vpop.f32.mrb[0].mxu0
        %v747 = vadd.f32 %v459, %v746
        %v748 = vpop.f32.mrb[0].mxu0
        %v749 = vadd.f32 %v463, %v748
        %v750 = vpop.f32.mrb[0].mxu0
        %v751 = vadd.f32 %v459, %v750
        %v752 = vpop.f32.mrb[0].mxu0
        %v753 = vadd.f32 %v463, %v752
        %754 = vmatprep.mubr.bf16.mxu0 0
        %755 = vmatmul.mubr.bf16.gmra.mrb[0].mxu0 %v538
        %v756 = vpop.f32.mrb[0].mxu0
        %v757 = vadd.f32 %v459, %v756
        %v758 = vpop.f32.mrb[0].mxu0
        %v759 = vadd.f32 %v463, %v758
        %v760 = vpop.f32.mrb[0].mxu0
        %v761 = vadd.f32 %v459, %v760
        %v762 = vpop.f32.mrb[0].mxu0
        %v763 = vadd.f32 %v463, %v762
        %764 = vmatprep.mubr.bf16.mxu0 0
        %765 = vmatmul.mubr.bf16.gmra.mrb[0].mxu0 %v539
        %v766 = vpop.f32.mrb[0].mxu0
        %v767 = vadd.f32 %v459, %v766
        %v768 = vpop.f32.mrb[0].mxu0
        %v769 = vadd.f32 %v463, %v768
        %v770 = vpop.f32.mrb[0].mxu0
        %v771 = vadd.f32 %v459, %v770
        %v772 = vpop.f32.mrb[0].mxu0
        %v773 = vadd.f32 %v463, %v772
        %774 = vmatprep.mubr.bf16.mxu0 0
        %775 = vmatmul.mubr.bf16.gmra.mrb[0].mxu0 %v540
        %v776 = vpop.f32.mrb[0].mxu0
        %v777 = vadd.f32 %v459, %v776
        %v778 = vpop.f32.mrb[0].mxu0
        %v779 = vadd.f32 %v463, %v778
        %v780 = vpop.f32.mrb[0].mxu0
        %v781 = vadd.f32 %v459, %v780
        %v782 = vpop.f32.mrb[0].mxu0
        %v783 = vadd.f32 %v463, %v782
        %784 = vmatprep.mubr.bf16.mxu0 0
        %785 = vmatmul.mubr.bf16.gmra.mrb[0].mxu0 %v541
        %v786 = vpop.f32.mrb[0].mxu0
        %v787 = vadd.f32 %v459, %v786
        %v788 = vpop.f32.mrb[0].mxu0
        %v789 = vadd.f32 %v463, %v788
        %v790 = vpop.f32.mrb[0].mxu0
        %v791 = vadd.f32 %v459, %v790
        %v792 = vpop.f32.mrb[0].mxu0
        %v793 = vadd.f32 %v463, %v792
        %794 = vmatprep.mubr.bf16.mxu0 0
        %795 = vmatmul.mubr.bf16.gmra.mrb[0].mxu0 %v542
        %v796 = vpop.f32.mrb[0].mxu0
        %v797 = vadd.f32 %v459, %v796
        %v798 = vpop.f32.mrb[0].mxu0
        %v799 = vadd.f32 %v463, %v798
        %v800 = vpop.f32.mrb[0].mxu0
        %v801 = vadd.f32 %v459, %v800
        %v802 = vpop.f32.mrb[0].mxu0
        %v803 = vadd.f32 %v463, %v802
        %804 = vmatprep.mubr.bf16.mxu0 0
        %805 = vmatmul.mubr.bf16.gmra.mrb[0].mxu0 %v543
        %v806 = vpop.f32.mrb[0].mxu0
        %v807 = vadd.f32 %v459, %v806
        %v808 = vpop.f32.mrb[0].mxu0
        %v809 = vadd.f32 %v463, %v808
        %v810 = vpop.f32.mrb[0].mxu0
        %v811 = vadd.f32 %v459, %v810
        %v812 = vpop.f32.mrb[0].mxu0
        %v813 = vadd.f32 %v463, %v812
        %814 = vmatprep.mubr.bf16.mxu0 0
        %815 = vmatmul.mubr.bf16.gmra.mrb[0].mxu0 %v544
        %v816 = vpop.f32.mrb[0].mxu0
        %v817 = vadd.f32 %v459, %v816
        %v818 = vpop.f32.mrb[0].mxu0
        %v819 = vadd.f32 %v463, %v818
        %v820 = vpop.f32.mrb[0].mxu0
        %v821 = vadd.f32 %v459, %v820
        %v822 = vpop.f32.mrb[0].mxu0
        %v823 = vadd.f32 %v463, %v822
        %824 = vmatprep.mubr.bf16.mxu0 0
        %825 = vmatmul.mubr.bf16.gmra.mrb[0].mxu0 %v545
        %v826 = vpop.f32.mrb[0].mxu0
        %v827 = vadd.f32 %v459, %v826
        %v828 = vpop.f32.mrb[0].mxu0
        %v829 = vadd.f32 %v463, %v828
        %v830 = vpop.f32.mrb[0].mxu0
        %v831 = vadd.f32 %v459, %v830
        %v832 = vpop.f32.mrb[0].mxu0
        %v833 = vadd.f32 %v463, %v832
        %834 = vdwg.mxu0
        %v835 = vmul.f32 %v677, 0.5
        %v836 = vmul.f32 %v679, 0.5
        %v837 = vmul.f32 %v681, 0.5
        %v838 = vmul.f32 %v683, 0.5
        %v839 = vmul.f32 %v687, 0.5
        %v840 = vmul.f32 %v689, 0.5
        %v841 = vmul.f32 %v691, 0.5
        %v842 = vmul.f32 %v693, 0.5
        %v843 = vmul.f32 %v697, 0.5
        %v844 = vmul.f32 %v699, 0.5
        %v845 = vmul.f32 %v701, 0.5
        %v846 = vmul.f32 %v703, 0.5
        %v847 = vmul.f32 %v707, 0.5
        %v848 = vmul.f32 %v709, 0.5
        %v849 = vmul.f32 %v711, 0.5
        %v850 = vmul.f32 %v713, 0.5
        %v851 = vmul.f32 %v717, 0.5
        %v852 = vmul.f32 %v719, 0.5
        %v853 = vmul.f32 %v721, 0.5
        %v854 = vmul.f32 %v723, 0.5
        %v855 = vmul.f32 %v727, 0.5
        %v856 = vmul.f32 %v729, 0.5
        %v857 = vmul.f32 %v731, 0.5
        %v858 = vmul.f32 %v733, 0.5
        %v859 = vmul.f32 %v737, 0.5
        %v860 = vmul.f32 %v739, 0.5
        %v861 = vmul.f32 %v741, 0.5
        %v862 = vmul.f32 %v743, 0.5
        %v863 = vmul.f32 %v747, 0.5
        %v864 = vmul.f32 %v749, 0.5
        %v865 = vmul.f32 %v751, 0.5
        %v866 = vmul.f32 %v753, 0.5
        %v867 = vmul.f32 %v757, 0.5
        %v868 = vmul.f32 %v759, 0.5
        %v869 = vmul.f32 %v761, 0.5
        %v870 = vmul.f32 %v763, 0.5
        %v871 = vmul.f32 %v767, 0.5
        %v872 = vmul.f32 %v769, 0.5
        %v873 = vmul.f32 %v771, 0.5
        %v874 = vmul.f32 %v773, 0.5
        %v875 = vmul.f32 %v777, 0.5
        %v876 = vmul.f32 %v779, 0.5
        %v877 = vmul.f32 %v781, 0.5
        %v878 = vmul.f32 %v783, 0.5
        %v879 = vmul.f32 %v787, 0.5
        %v880 = vmul.f32 %v789, 0.5
        %v881 = vmul.f32 %v791, 0.5
        %v882 = vmul.f32 %v793, 0.5
        %v883 = vmul.f32 %v797, 0.5
        %v884 = vmul.f32 %v799, 0.5
        %v885 = vmul.f32 %v801, 0.5
        %v886 = vmul.f32 %v803, 0.5
        %v887 = vmul.f32 %v807, 0.5
        %v888 = vmul.f32 %v809, 0.5
        %v889 = vmul.f32 %v811, 0.5
        %v890 = vmul.f32 %v813, 0.5
        %v891 = vmul.f32 %v817, 0.5
        %v892 = vmul.f32 %v819, 0.5
        %v893 = vmul.f32 %v821, 0.5
        %v894 = vmul.f32 %v823, 0.5
        %v895 = vmul.f32 %v827, 0.5
        %v896 = vmul.f32 %v829, 0.5
        %v897 = vmul.f32 %v831, 0.5
        %v898 = vmul.f32 %v833, 0.5
        %v899 = vmul.f32 %v677, 0.70710677
        %v900 = vmul.f32 %v679, 0.70710677
        %v901 = vmul.f32 %v681, 0.70710677
        %v902 = vmul.f32 %v683, 0.70710677
        %v903 = vmul.f32 %v687, 0.70710677
        %v904 = vmul.f32 %v689, 0.70710677
        %v905 = vmul.f32 %v691, 0.70710677
        %v906 = vmul.f32 %v693, 0.70710677
        %v907 = vmul.f32 %v697, 0.70710677
        %v908 = vmul.f32 %v699, 0.70710677
        %v909 = vmul.f32 %v701, 0.70710677
        %v910 = vmul.f32 %v703, 0.70710677
        %v911 = vmul.f32 %v707, 0.70710677
        %v912 = vmul.f32 %v709, 0.70710677
        %v913 = vmul.f32 %v711, 0.70710677
        %v914 = vmul.f32 %v713, 0.70710677
        %v915 = vmul.f32 %v717, 0.70710677
        %v916 = vmul.f32 %v719, 0.70710677
        %v917 = vmul.f32 %v721, 0.70710677
        %v918 = vmul.f32 %v723, 0.70710677
        %v919 = vmul.f32 %v727, 0.70710677
        %v920 = vmul.f32 %v729, 0.70710677
        %v921 = vmul.f32 %v731, 0.70710677
        %v922 = vmul.f32 %v733, 0.70710677
        %v923 = vmul.f32 %v737, 0.70710677
        %v924 = vmul.f32 %v739, 0.70710677
        %v925 = vmul.f32 %v741, 0.70710677
        %v926 = vmul.f32 %v743, 0.70710677
        %v927 = vmul.f32 %v747, 0.70710677
        %v928 = vmul.f32 %v749, 0.70710677
        %v929 = vmul.f32 %v751, 0.70710677
        %v930 = vmul.f32 %v753, 0.70710677
        %v931 = vmul.f32 %v757, 0.70710677
        %v932 = vmul.f32 %v759, 0.70710677
        %v933 = vmul.f32 %v761, 0.70710677
        %v934 = vmul.f32 %v763, 0.70710677
        %v935 = vmul.f32 %v767, 0.70710677
        %v936 = vmul.f32 %v769, 0.70710677
        %v937 = vmul.f32 %v771, 0.70710677
        %v938 = vmul.f32 %v773, 0.70710677
        %v939 = vmul.f32 %v777, 0.70710677
        %v940 = vmul.f32 %v779, 0.70710677
        %v941 = vmul.f32 %v781, 0.70710677
        %v942 = vmul.f32 %v783, 0.70710677
        %v943 = vmul.f32 %v787, 0.70710677
        %v944 = vmul.f32 %v789, 0.70710677
        %v945 = vmul.f32 %v791, 0.70710677
        %v946 = vmul.f32 %v793, 0.70710677
        %v947 = vmul.f32 %v797, 0.70710677
        %v948 = vmul.f32 %v799, 0.70710677
        %v949 = vmul.f32 %v801, 0.70710677
        %v950 = vmul.f32 %v803, 0.70710677
        %v951 = vmul.f32 %v807, 0.70710677
        %v952 = vmul.f32 %v809, 0.70710677
        %v953 = vmul.f32 %v811, 0.70710677
        %v954 = vmul.f32 %v813, 0.70710677
        %v955 = vmul.f32 %v817, 0.70710677
        %v956 = vmul.f32 %v819, 0.70710677
        %v957 = vmul.f32 %v821, 0.70710677
        %v958 = vmul.f32 %v823, 0.70710677
        %v959 = vmul.f32 %v827, 0.70710677
        %v960 = vmul.f32 %v829, 0.70710677
        %v961 = vmul.f32 %v831, 0.70710677
        %v962 = vmul.f32 %v833, 0.70710677
        %v963 = verf.f32.pop %v899
        %v964 = verf.f32.pop %v900
        %v965 = verf.f32.pop %v901
        %v966 = verf.f32.pop %v902
        %v967 = verf.f32.pop %v903
        %v968 = verf.f32.pop %v904
        %v969 = verf.f32.pop %v905
        %v970 = verf.f32.pop %v906
        %v971 = verf.f32.pop %v907
        %v972 = verf.f32.pop %v908
        %v973 = verf.f32.pop %v909
        %v974 = verf.f32.pop %v910
        %v975 = verf.f32.pop %v911
        %v976 = verf.f32.pop %v912
        %v977 = verf.f32.pop %v913
        %v978 = verf.f32.pop %v914
        %v979 = verf.f32.pop %v915
        %v980 = verf.f32.pop %v916
        %v981 = verf.f32.pop %v917
        %v982 = verf.f32.pop %v918
        %v983 = verf.f32.pop %v919
        %v984 = verf.f32.pop %v920
        %v985 = verf.f32.pop %v921
        %v986 = verf.f32.pop %v922
        %v987 = verf.f32.pop %v923
        %v988 = verf.f32.pop %v924
        %v989 = verf.f32.pop %v925
        %v990 = verf.f32.pop %v926
        %v991 = verf.f32.pop %v927
        %v992 = verf.f32.pop %v928
        %v993 = verf.f32.pop %v929
        %v994 = verf.f32.pop %v930
        %v995 = verf.f32.pop %v931
        %v996 = verf.f32.pop %v932
        %v997 = verf.f32.pop %v933
        %v998 = verf.f32.pop %v934
        %v999 = verf.f32.pop %v935
        %v1000 = verf.f32.pop %v936
        %v1001 = verf.f32.pop %v937
        %v1002 = verf.f32.pop %v938
        %v1003 = verf.f32.pop %v939
        %v1004 = verf.f32.pop %v940
        %v1005 = verf.f32.pop %v941
        %v1006 = verf.f32.pop %v942
        %v1007 = verf.f32.pop %v943
        %v1008 = verf.f32.pop %v944
        %v1009 = verf.f32.pop %v945
        %v1010 = verf.f32.pop %v946
        %v1011 = verf.f32.pop %v947
        %v1012 = verf.f32.pop %v948
        %v1013 = verf.f32.pop %v949
        %v1014 = verf.f32.pop %v950
        %v1015 = verf.f32.pop %v951
        %v1016 = verf.f32.pop %v952
        %v1017 = verf.f32.pop %v953
        %v1018 = verf.f32.pop %v954
        %v1019 = verf.f32.pop %v955
        %v1020 = verf.f32.pop %v956
        %v1021 = verf.f32.pop %v957
        %v1022 = verf.f32.pop %v958
        %v1023 = verf.f32.pop %v959
        %v1024 = verf.f32.pop %v960
        %v1025 = verf.f32.pop %v961
        %v1026 = verf.f32.pop %v962
        %v1027 = vadd.f32 %v963, 1.0
        %v1028 = vadd.f32 %v964, 1.0
        %v1029 = vadd.f32 %v965, 1.0
        %v1030 = vadd.f32 %v966, 1.0
        %v1031 = vadd.f32 %v967, 1.0
        %v1032 = vadd.f32 %v968, 1.0
        %v1033 = vadd.f32 %v969, 1.0
        %v1034 = vadd.f32 %v970, 1.0
        %v1035 = vadd.f32 %v971, 1.0
        %v1036 = vadd.f32 %v972, 1.0
        %v1037 = vadd.f32 %v973, 1.0
        %v1038 = vadd.f32 %v974, 1.0
        %v1039 = vadd.f32 %v975, 1.0
        %v1040 = vadd.f32 %v976, 1.0
        %v1041 = vadd.f32 %v977, 1.0
        %v1042 = vadd.f32 %v978, 1.0
        %v1043 = vadd.f32 %v979, 1.0
        %v1044 = vadd.f32 %v980, 1.0
        %v1045 = vadd.f32 %v981, 1.0
        %v1046 = vadd.f32 %v982, 1.0
        %v1047 = vadd.f32 %v983, 1.0
        %v1048 = vadd.f32 %v984, 1.0
        %v1049 = vadd.f32 %v985, 1.0
        %v1050 = vadd.f32 %v986, 1.0
        %v1051 = vadd.f32 %v987, 1.0
        %v1052 = vadd.f32 %v988, 1.0
        %v1053 = vadd.f32 %v989, 1.0
        %v1054 = vadd.f32 %v990, 1.0
        %v1055 = vadd.f32 %v991, 1.0
        %v1056 = vadd.f32 %v992, 1.0
        %v1057 = vadd.f32 %v993, 1.0
        %v1058 = vadd.f32 %v994, 1.0
        %v1059 = vadd.f32 %v995, 1.0
        %v1060 = vadd.f32 %v996, 1.0
        %v1061 = vadd.f32 %v997, 1.0
        %v1062 = vadd.f32 %v998, 1.0
        %v1063 = vadd.f32 %v999, 1.0
        %v1064 = vadd.f32 %v1000, 1.0
        %v1065 = vadd.f32 %v1001, 1.0
        %v1066 = vadd.f32 %v1002, 1.0
        %v1067 = vadd.f32 %v1003, 1.0
        %v1068 = vadd.f32 %v1004, 1.0
        %v1069 = vadd.f32 %v1005, 1.0
        %v1070 = vadd.f32 %v1006, 1.0
        %v1071 = vadd.f32 %v1007, 1.0
        %v1072 = vadd.f32 %v1008, 1.0
        %v1073 = vadd.f32 %v1009, 1.0
        %v1074 = vadd.f32 %v1010, 1.0
        %v1075 = vadd.f32 %v1011, 1.0
        %v1076 = vadd.f32 %v1012, 1.0
        %v1077 = vadd.f32 %v1013, 1.0
        %v1078 = vadd.f32 %v1014, 1.0
        %v1079 = vadd.f32 %v1015, 1.0
        %v1080 = vadd.f32 %v1016, 1.0
        %v1081 = vadd.f32 %v1017, 1.0
        %v1082 = vadd.f32 %v1018, 1.0
        %v1083 = vadd.f32 %v1019, 1.0
        %v1084 = vadd.f32 %v1020, 1.0
        %v1085 = vadd.f32 %v1021, 1.0
        %v1086 = vadd.f32 %v1022, 1.0
        %v1087 = vadd.f32 %v1023, 1.0
        %v1088 = vadd.f32 %v1024, 1.0
        %v1089 = vadd.f32 %v1025, 1.0
        %v1090 = vadd.f32 %v1026, 1.0
        %v1091 = vmul.f32 %v835, %v1027
        %v1092 = vmul.f32 %v836, %v1028
        %v1093 = vmul.f32 %v837, %v1029
        %v1094 = vmul.f32 %v838, %v1030
        %v1095 = vmul.f32 %v839, %v1031
        %v1096 = vmul.f32 %v840, %v1032
        %v1097 = vmul.f32 %v841, %v1033
        %v1098 = vmul.f32 %v842, %v1034
        %v1099 = vmul.f32 %v843, %v1035
        %v1100 = vmul.f32 %v844, %v1036
        %v1101 = vmul.f32 %v845, %v1037
        %v1102 = vmul.f32 %v846, %v1038
        %v1103 = vmul.f32 %v847, %v1039
        %v1104 = vmul.f32 %v848, %v1040
        %v1105 = vmul.f32 %v849, %v1041
        %v1106 = vmul.f32 %v850, %v1042
        %v1107 = vmul.f32 %v851, %v1043
        %v1108 = vmul.f32 %v852, %v1044
        %v1109 = vmul.f32 %v853, %v1045
        %v1110 = vmul.f32 %v854, %v1046
        %v1111 = vmul.f32 %v855, %v1047
        %v1112 = vmul.f32 %v856, %v1048
        %v1113 = vmul.f32 %v857, %v1049
        %v1114 = vmul.f32 %v858, %v1050
        %v1115 = vmul.f32 %v859, %v1051
        %v1116 = vmul.f32 %v860, %v1052
        %v1117 = vmul.f32 %v861, %v1053
        %v1118 = vmul.f32 %v862, %v1054
        %v1119 = vmul.f32 %v863, %v1055
        %v1120 = vmul.f32 %v864, %v1056
        %v1121 = vmul.f32 %v865, %v1057
        %v1122 = vmul.f32 %v866, %v1058
        %v1123 = vmul.f32 %v867, %v1059
        %v1124 = vmul.f32 %v868, %v1060
        %v1125 = vmul.f32 %v869, %v1061
        %v1126 = vmul.f32 %v870, %v1062
        %v1127 = vmul.f32 %v871, %v1063
        %v1128 = vmul.f32 %v872, %v1064
        %v1129 = vmul.f32 %v873, %v1065
        %v1130 = vmul.f32 %v874, %v1066
        %v1131 = vmul.f32 %v875, %v1067
        %v1132 = vmul.f32 %v876, %v1068
        %v1133 = vmul.f32 %v877, %v1069
        %v1134 = vmul.f32 %v878, %v1070
        %v1135 = vmul.f32 %v879, %v1071
        %v1136 = vmul.f32 %v880, %v1072
        %v1137 = vmul.f32 %v881, %v1073
        %v1138 = vmul.f32 %v882, %v1074
        %v1139 = vmul.f32 %v883, %v1075
        %v1140 = vmul.f32 %v884, %v1076
        %v1141 = vmul.f32 %v885, %v1077
        %v1142 = vmul.f32 %v886, %v1078
        %v1143 = vmul.f32 %v887, %v1079
        %v1144 = vmul.f32 %v888, %v1080
        %v1145 = vmul.f32 %v889, %v1081
        %v1146 = vmul.f32 %v890, %v1082
        %v1147 = vmul.f32 %v891, %v1083
        %v1148 = vmul.f32 %v892, %v1084
        %v1149 = vmul.f32 %v893, %v1085
        %v1150 = vmul.f32 %v894, %v1086
        %v1151 = vmul.f32 %v895, %v1087
        %v1152 = vmul.f32 %v896, %v1088
        %v1153 = vmul.f32 %v897, %v1089
        %v1154 = vmul.f32 %v898, %v1090
        %v1155 = vld [vmem:[#allocation2] sm:$0xff]
        %v1156 = vld [vmem:[#allocation2 + $0x8] sm:$0xff]
        %v1157 = vld [vmem:[#allocation2 + $0x10] sm:$0xff]
        %v1158 = vld [vmem:[#allocation2 + $0x18] sm:$0xff]
        %v1159 = vld [vmem:[#allocation2 + $0x20] sm:$0xff]
        %v1160 = vld [vmem:[#allocation2 + $0x28] sm:$0xff]
        %v1161 = vld [vmem:[#allocation2 + $0x30] sm:$0xff]
        %v1162 = vld [vmem:[#allocation2 + $0x38] sm:$0xff]
        %v1163 = vld [vmem:[#allocation2 + $0x40] sm:$0xff]
        %v1164 = vld [vmem:[#allocation2 + $0x48] sm:$0xff]
        %v1165 = vld [vmem:[#allocation2 + $0x50] sm:$0xff]
        %v1166 = vld [vmem:[#allocation2 + $0x58] sm:$0xff]
        %v1167 = vld [vmem:[#allocation2 + $0x60] sm:$0xff]
        %v1168 = vld [vmem:[#allocation2 + $0x68] sm:$0xff]
        %v1169 = vld [vmem:[#allocation2 + $0x70] sm:$0xff]
        %v1170 = vld [vmem:[#allocation2 + $0x78] sm:$0xff]
        %v1171 = vld [vmem:[#allocation2 + $0x80] sm:$0xff]
        %v1172 = vld [vmem:[#allocation2 + $0x88] sm:$0xff]
        %v1173 = vld [vmem:[#allocation2 + $0x90] sm:$0xff]
        %v1174 = vld [vmem:[#allocation2 + $0x98] sm:$0xff]
        %v1175 = vld [vmem:[#allocation2 + $0xa0] sm:$0xff]
        %v1176 = vld [vmem:[#allocation2 + $0xa8] sm:$0xff]
        %v1177 = vld [vmem:[#allocation2 + $0xb0] sm:$0xff]
        %v1178 = vld [vmem:[#allocation2 + $0xb8] sm:$0xff]
        %v1179 = vld [vmem:[#allocation2 + $0xc0] sm:$0xff]
        %v1180 = vld [vmem:[#allocation2 + $0xc8] sm:$0xff]
        %v1181 = vld [vmem:[#allocation2 + $0xd0] sm:$0xff]
        %v1182 = vld [vmem:[#allocation2 + $0xd8] sm:$0xff]
        %v1183 = vld [vmem:[#allocation2 + $0xe0] sm:$0xff]
        %v1184 = vld [vmem:[#allocation2 + $0xe8] sm:$0xff]
        %v1185 = vld [vmem:[#allocation2 + $0xf0] sm:$0xff]
        %v1186 = vld [vmem:[#allocation2 + $0xf8] sm:$0xff]
        %v1187 = vpack.c.bf16 %v1093, %v1091
        %v1188 = vpack.c.bf16 %v1094, %v1092
        %v1189 = vpack.c.bf16 %v1097, %v1095
        %v1190 = vpack.c.bf16 %v1098, %v1096
        %v1191 = vpack.c.bf16 %v1101, %v1099
        %v1192 = vpack.c.bf16 %v1102, %v1100
        %v1193 = vpack.c.bf16 %v1105, %v1103
        %v1194 = vpack.c.bf16 %v1106, %v1104
        %v1195 = vpack.c.bf16 %v1109, %v1107
        %v1196 = vpack.c.bf16 %v1110, %v1108
        %v1197 = vpack.c.bf16 %v1113, %v1111
        %v1198 = vpack.c.bf16 %v1114, %v1112
        %v1199 = vpack.c.bf16 %v1117, %v1115
        %v1200 = vpack.c.bf16 %v1118, %v1116
        %v1201 = vpack.c.bf16 %v1121, %v1119
        %v1202 = vpack.c.bf16 %v1122, %v1120
        %v1203 = vpack.c.bf16 %v1125, %v1123
        %v1204 = vpack.c.bf16 %v1126, %v1124
        %v1205 = vpack.c.bf16 %v1129, %v1127
        %v1206 = vpack.c.bf16 %v1130, %v1128
        %v1207 = vpack.c.bf16 %v1133, %v1131
        %v1208 = vpack.c.bf16 %v1134, %v1132
        %v1209 = vpack.c.bf16 %v1137, %v1135
        %v1210 = vpack.c.bf16 %v1138, %v1136
        %v1211 = vpack.c.bf16 %v1141, %v1139
        %v1212 = vpack.c.bf16 %v1142, %v1140
        %v1213 = vpack.c.bf16 %v1145, %v1143
        %v1214 = vpack.c.bf16 %v1146, %v1144
        %v1215 = vpack.c.bf16 %v1149, %v1147
        %v1216 = vpack.c.bf16 %v1150, %v1148
        %v1217 = vpack.c.bf16 %v1153, %v1151
        %v1218 = vpack.c.bf16 %v1154, %v1152
        %v1219 = vld [vmem:[%s311] sm:$0xf]
        %v1220 = vld [vmem:[%s311 + $0x4] sm:$0xf]
        %v1221 = vld [vmem:[%s311 + $0x8] sm:$0xf]
        %v1222 = vld [vmem:[%s311 + $0xc] sm:$0xf]
        %v1223 = vld [vmem:[%s311 + $0x10] sm:$0xf]
        %v1224 = vld [vmem:[%s311 + $0x14] sm:$0xf]
        %v1225 = vld [vmem:[%s311 + $0x18] sm:$0xf]
        %v1226 = vld [vmem:[%s311 + $0x1c] sm:$0xf]
        %v1227 = vld [vmem:[%s311 + $0x20] sm:$0xf]
        %v1228 = vld [vmem:[%s311 + $0x24] sm:$0xf]
        %v1229 = vld [vmem:[%s311 + $0x28] sm:$0xf]
        %v1230 = vld [vmem:[%s311 + $0x2c] sm:$0xf]
        %v1231 = vld [vmem:[%s311 + $0x30] sm:$0xf]
        %v1232 = vld [vmem:[%s311 + $0x34] sm:$0xf]
        %v1233 = vld [vmem:[%s311 + $0x38] sm:$0xf]
        %v1234 = vld [vmem:[%s311 + $0x3c] sm:$0xf]
        %v1235 = vld [vmem:[%s311 + $0x40] sm:$0xf]
        %v1236 = vld [vmem:[%s311 + $0x44] sm:$0xf]
        %v1237 = vld [vmem:[%s311 + $0x48] sm:$0xf]
        %v1238 = vld [vmem:[%s311 + $0x4c] sm:$0xf]
        %v1239 = vld [vmem:[%s311 + $0x50] sm:$0xf]
        %v1240 = vld [vmem:[%s311 + $0x54] sm:$0xf]
        %v1241 = vld [vmem:[%s311 + $0x58] sm:$0xf]
        %v1242 = vld [vmem:[%s311 + $0x5c] sm:$0xf]
        %v1243 = vld [vmem:[%s311 + $0x60] sm:$0xf]
        %v1244 = vld [vmem:[%s311 + $0x64] sm:$0xf]
        %v1245 = vld [vmem:[%s311 + $0x68] sm:$0xf]
        %v1246 = vld [vmem:[%s311 + $0x6c] sm:$0xf]
        %v1247 = vld [vmem:[%s311 + $0x70] sm:$0xf]
        %v1248 = vld [vmem:[%s311 + $0x74] sm:$0xf]
        %v1249 = vld [vmem:[%s311 + $0x78] sm:$0xf]
        %v1250 = vld [vmem:[%s311 + $0x7c] sm:$0xf]
        %v1283 = vunpack.c.l.b16 %v1219
        %v1284 = vunpack.c.l.b16 %v1220
        %v1285 = vunpack.c.l.b16 %v1221
        %v1286 = vunpack.c.l.b16 %v1222
        %v1287 = vunpack.c.l.b16 %v1223
        %v1288 = vunpack.c.l.b16 %v1224
        %v1289 = vunpack.c.l.b16 %v1225
        %v1290 = vunpack.c.l.b16 %v1226
        %v1291 = vunpack.c.l.b16 %v1227
        %v1292 = vunpack.c.l.b16 %v1228
        %v1293 = vunpack.c.l.b16 %v1229
        %v1294 = vunpack.c.l.b16 %v1230
        %v1295 = vunpack.c.l.b16 %v1231
        %v1296 = vunpack.c.l.b16 %v1232
        %v1297 = vunpack.c.l.b16 %v1233
        %v1298 = vunpack.c.l.b16 %v1234
        %v1299 = vunpack.c.l.b16 %v1235
        %v1300 = vunpack.c.l.b16 %v1236
        %v1301 = vunpack.c.l.b16 %v1237
        %v1302 = vunpack.c.l.b16 %v1238
        %v1303 = vunpack.c.l.b16 %v1239
        %v1304 = vunpack.c.l.b16 %v1240
        %v1305 = vunpack.c.l.b16 %v1241
        %v1306 = vunpack.c.l.b16 %v1242
        %v1307 = vunpack.c.l.b16 %v1243
        %v1308 = vunpack.c.l.b16 %v1244
        %v1309 = vunpack.c.l.b16 %v1245
        %v1310 = vunpack.c.l.b16 %v1246
        %v1311 = vunpack.c.l.b16 %v1247
        %v1312 = vunpack.c.l.b16 %v1248
        %v1313 = vunpack.c.l.b16 %v1249
        %v1314 = vunpack.c.l.b16 %v1250
        %v1315 = vpack.c.b16 %v1284, %v1283
        %v1316 = vpack.c.b16 %v1286, %v1285
        %v1317 = vpack.c.b16 %v1288, %v1287
        %v1318 = vpack.c.b16 %v1290, %v1289
        %v1319 = vpack.c.b16 %v1292, %v1291
        %v1320 = vpack.c.b16 %v1294, %v1293
        %v1321 = vpack.c.b16 %v1296, %v1295
        %v1322 = vpack.c.b16 %v1298, %v1297
        %v1323 = vpack.c.b16 %v1300, %v1299
        %v1324 = vpack.c.b16 %v1302, %v1301
        %v1325 = vpack.c.b16 %v1304, %v1303
        %v1326 = vpack.c.b16 %v1306, %v1305
        %v1327 = vpack.c.b16 %v1308, %v1307
        %v1328 = vpack.c.b16 %v1310, %v1309
        %v1329 = vpack.c.b16 %v1312, %v1311
        %v1330 = vpack.c.b16 %v1314, %v1313
        %1347 = vmatprep.subr.bf16.mxu0 0
        %1348 = vmatpush1.bf16.msra.mxu0 %v1315
        %1349 = vmatprep.subr.bf16.mxu0 0
        %1350 = vmatpush1.bf16.msra.mxu0 %v1316
        %1351 = vmatprep.subr.bf16.mxu0 0
        %1352 = vmatpush1.bf16.msra.mxu0 %v1317
        %1353 = vmatprep.subr.bf16.mxu0 0
        %1354 = vmatpush1.bf16.msra.mxu0 %v1318
        %1355 = vmatprep.subr.bf16.mxu0 0
        %1356 = vmatpush1.bf16.msra.mxu0 %v1319
        %1357 = vmatprep.subr.bf16.mxu0 0
        %1358 = vmatpush1.bf16.msra.mxu0 %v1320
        %1359 = vmatprep.subr.bf16.mxu0 0
        %1360 = vmatpush1.bf16.msra.mxu0 %v1321
        %1361 = vmatprep.subr.bf16.mxu0 0
        %1362 = vmatpush1.bf16.msra.mxu0 %v1322
        %1363 = vmatprep.subr.bf16.mxu0 0
        %1364 = vmatpush1.bf16.msra.mxu0 %v1323
        %1365 = vmatprep.subr.bf16.mxu0 0
        %1366 = vmatpush1.bf16.msra.mxu0 %v1324
        %1367 = vmatprep.subr.bf16.mxu0 0
        %1368 = vmatpush1.bf16.msra.mxu0 %v1325
        %1369 = vmatprep.subr.bf16.mxu0 0
        %1370 = vmatpush1.bf16.msra.mxu0 %v1326
        %1371 = vmatprep.subr.bf16.mxu0 0
        %1372 = vmatpush1.bf16.msra.mxu0 %v1327
        %1373 = vmatprep.subr.bf16.mxu0 0
        %1374 = vmatpush1.bf16.msra.mxu0 %v1328
        %1375 = vmatprep.subr.bf16.mxu0 0
        %1376 = vmatpush1.bf16.msra.mxu0 %v1329
        %1377 = vmatprep.subr.bf16.mxu0 0
        %1378 = vmatpush1.bf16.msra.mxu0 %v1330
        %1379 = vmatprep.mubr.bf16.mxu0 %v1188
        %1380 = vmatmul.mubr.bf16.gmra.mrb[0].mxu0 %v1187
        %v1381 = vpop.f32.mrb[0].mxu0
        %v1382 = vadd.f32 0.0, %v1381
        %v1383 = vpop.f32.mrb[0].mxu0
        %v1384 = vpop.f32.mrb[0].mxu0
        %v1385 = vadd.f32 0.0, %v1384
        %v1386 = vpop.f32.mrb[0].mxu0
        %1387 = vmatprep.mubr.bf16.mxu0 %v1190
        %1388 = vmatmul.mubr.bf16.gmra.mrb[0].mxu0 %v1189
        %v1389 = vpop.f32.mrb[0].mxu0
        %v1390 = vadd.f32 0.0, %v1389
        %v1391 = vpop.f32.mrb[0].mxu0
        %v1392 = vpop.f32.mrb[0].mxu0
        %v1393 = vadd.f32 0.0, %v1392
        %v1394 = vpop.f32.mrb[0].mxu0
        %1395 = vmatprep.mubr.bf16.mxu0 %v1192
        %1396 = vmatmul.mubr.bf16.gmra.mrb[0].mxu0 %v1191
        %v1397 = vpop.f32.mrb[0].mxu0
        %v1398 = vadd.f32 0.0, %v1397
        %v1399 = vpop.f32.mrb[0].mxu0
        %v1400 = vpop.f32.mrb[0].mxu0
        %v1401 = vadd.f32 0.0, %v1400
        %v1402 = vpop.f32.mrb[0].mxu0
        %1403 = vmatprep.mubr.bf16.mxu0 %v1194
        %1404 = vmatmul.mubr.bf16.gmra.mrb[0].mxu0 %v1193
        %v1405 = vpop.f32.mrb[0].mxu0
        %v1406 = vadd.f32 0.0, %v1405
        %v1407 = vpop.f32.mrb[0].mxu0
        %v1408 = vpop.f32.mrb[0].mxu0
        %v1409 = vadd.f32 0.0, %v1408
        %v1410 = vpop.f32.mrb[0].mxu0
        %1411 = vmatprep.mubr.bf16.mxu0 %v1196
        %1412 = vmatmul.mubr.bf16.gmra.mrb[0].mxu0 %v1195
        %v1413 = vpop.f32.mrb[0].mxu0
        %v1414 = vadd.f32 0.0, %v1413
        %v1415 = vpop.f32.mrb[0].mxu0
        %v1416 = vpop.f32.mrb[0].mxu0
        %v1417 = vadd.f32 0.0, %v1416
        %v1418 = vpop.f32.mrb[0].mxu0
        %1419 = vmatprep.mubr.bf16.mxu0 %v1198
        %1420 = vmatmul.mubr.bf16.gmra.mrb[0].mxu0 %v1197
        %v1421 = vpop.f32.mrb[0].mxu0
        %v1422 = vadd.f32 0.0, %v1421
        %v1423 = vpop.f32.mrb[0].mxu0
        %v1424 = vpop.f32.mrb[0].mxu0
        %v1425 = vadd.f32 0.0, %v1424
        %v1426 = vpop.f32.mrb[0].mxu0
        %1427 = vmatprep.mubr.bf16.mxu0 %v1200
        %1428 = vmatmul.mubr.bf16.gmra.mrb[0].mxu0 %v1199
        %v1429 = vpop.f32.mrb[0].mxu0
        %v1430 = vadd.f32 0.0, %v1429
        %v1431 = vpop.f32.mrb[0].mxu0
        %v1432 = vpop.f32.mrb[0].mxu0
        %v1433 = vadd.f32 0.0, %v1432
        %v1434 = vpop.f32.mrb[0].mxu0
        %1435 = vmatprep.mubr.bf16.mxu0 %v1202
        %1436 = vmatmul.mubr.bf16.gmra.mrb[0].mxu0 %v1201
        %v1437 = vpop.f32.mrb[0].mxu0
        %v1438 = vadd.f32 0.0, %v1437
        %v1439 = vpop.f32.mrb[0].mxu0
        %v1440 = vpop.f32.mrb[0].mxu0
        %v1441 = vadd.f32 0.0, %v1440
        %v1442 = vpop.f32.mrb[0].mxu0
        %1443 = vmatprep.mubr.bf16.mxu0 %v1204
        %1444 = vmatmul.mubr.bf16.gmra.mrb[0].mxu0 %v1203
        %v1445 = vpop.f32.mrb[0].mxu0
        %v1446 = vadd.f32 0.0, %v1445
        %v1447 = vpop.f32.mrb[0].mxu0
        %v1448 = vpop.f32.mrb[0].mxu0
        %v1449 = vadd.f32 0.0, %v1448
        %v1450 = vpop.f32.mrb[0].mxu0
        %1451 = vmatprep.mubr.bf16.mxu0 %v1206
        %1452 = vmatmul.mubr.bf16.gmra.mrb[0].mxu0 %v1205
        %v1453 = vpop.f32.mrb[0].mxu0
        %v1454 = vadd.f32 0.0, %v1453
        %v1455 = vpop.f32.mrb[0].mxu0
        %v1456 = vpop.f32.mrb[0].mxu0
        %v1457 = vadd.f32 0.0, %v1456
        %v1458 = vpop.f32.mrb[0].mxu0
        %1459 = vmatprep.mubr.bf16.mxu0 %v1208
        %1460 = vmatmul.mubr.bf16.gmra.mrb[0].mxu0 %v1207
        %v1461 = vpop.f32.mrb[0].mxu0
        %v1462 = vadd.f32 0.0, %v1461
        %v1463 = vpop.f32.mrb[0].mxu0
        %v1464 = vpop.f32.mrb[0].mxu0
        %v1465 = vadd.f32 0.0, %v1464
        %v1466 = vpop.f32.mrb[0].mxu0
        %1467 = vmatprep.mubr.bf16.mxu0 %v1210
        %1468 = vmatmul.mubr.bf16.gmra.mrb[0].mxu0 %v1209
        %v1469 = vpop.f32.mrb[0].mxu0
        %v1470 = vadd.f32 0.0, %v1469
        %v1471 = vpop.f32.mrb[0].mxu0
        %v1472 = vpop.f32.mrb[0].mxu0
        %v1473 = vadd.f32 0.0, %v1472
        %v1474 = vpop.f32.mrb[0].mxu0
        %1475 = vmatprep.mubr.bf16.mxu0 %v1212
        %1476 = vmatmul.mubr.bf16.gmra.mrb[0].mxu0 %v1211
        %v1477 = vpop.f32.mrb[0].mxu0
        %v1478 = vadd.f32 0.0, %v1477
        %v1479 = vpop.f32.mrb[0].mxu0
        %v1480 = vpop.f32.mrb[0].mxu0
        %v1481 = vadd.f32 0.0, %v1480
        %v1482 = vpop.f32.mrb[0].mxu0
        %1483 = vmatprep.mubr.bf16.mxu0 %v1214
        %1484 = vmatmul.mubr.bf16.gmra.mrb[0].mxu0 %v1213
        %v1485 = vpop.f32.mrb[0].mxu0
        %v1486 = vadd.f32 0.0, %v1485
        %v1487 = vpop.f32.mrb[0].mxu0
        %v1488 = vpop.f32.mrb[0].mxu0
        %v1489 = vadd.f32 0.0, %v1488
        %v1490 = vpop.f32.mrb[0].mxu0
        %1491 = vmatprep.mubr.bf16.mxu0 %v1216
        %1492 = vmatmul.mubr.bf16.gmra.mrb[0].mxu0 %v1215
        %v1493 = vpop.f32.mrb[0].mxu0
        %v1494 = vadd.f32 0.0, %v1493
        %v1495 = vpop.f32.mrb[0].mxu0
        %v1496 = vpop.f32.mrb[0].mxu0
        %v1497 = vadd.f32 0.0, %v1496
        %v1498 = vpop.f32.mrb[0].mxu0
        %1499 = vmatprep.mubr.bf16.mxu0 %v1218
        %1500 = vmatmul.mubr.bf16.gmra.mrb[0].mxu0 %v1217
        %v1501 = vpop.f32.mrb[0].mxu0
        %v1502 = vadd.f32 0.0, %v1501
        %v1503 = vpop.f32.mrb[0].mxu0
        %v1504 = vpop.f32.mrb[0].mxu0
        %v1505 = vadd.f32 0.0, %v1504
        %v1506 = vpop.f32.mrb[0].mxu0
        %1507 = vdwg.mxu0
        %v1508 = vadd.f32 %v1155, %v1382
        %v1509 = vadd.f32 %v1156, %v1385
        %v1510 = vadd.f32 %v1157, %v1390
        %v1511 = vadd.f32 %v1158, %v1393
        %v1512 = vadd.f32 %v1159, %v1398
        %v1513 = vadd.f32 %v1160, %v1401
        %v1514 = vadd.f32 %v1161, %v1406
        %v1515 = vadd.f32 %v1162, %v1409
        %v1516 = vadd.f32 %v1163, %v1414
        %v1517 = vadd.f32 %v1164, %v1417
        %v1518 = vadd.f32 %v1165, %v1422
        %v1519 = vadd.f32 %v1166, %v1425
        %v1520 = vadd.f32 %v1167, %v1430
        %v1521 = vadd.f32 %v1168, %v1433
        %v1522 = vadd.f32 %v1169, %v1438
        %v1523 = vadd.f32 %v1170, %v1441
        %v1524 = vadd.f32 %v1171, %v1446
        %v1525 = vadd.f32 %v1172, %v1449
        %v1526 = vadd.f32 %v1173, %v1454
        %v1527 = vadd.f32 %v1174, %v1457
        %v1528 = vadd.f32 %v1175, %v1462
        %v1529 = vadd.f32 %v1176, %v1465
        %v1530 = vadd.f32 %v1177, %v1470
        %v1531 = vadd.f32 %v1178, %v1473
        %v1532 = vadd.f32 %v1179, %v1478
        %v1533 = vadd.f32 %v1180, %v1481
        %v1534 = vadd.f32 %v1181, %v1486
        %v1535 = vadd.f32 %v1182, %v1489
        %v1536 = vadd.f32 %v1183, %v1494
        %v1537 = vadd.f32 %v1184, %v1497
        %v1538 = vadd.f32 %v1185, %v1502
        %v1539 = vadd.f32 %v1186, %v1505
        %1540 = vst [vmem:[#allocation2] sm:$0xff] %v1508
        %1541 = vst [vmem:[#allocation2 + $0x8] sm:$0xff] %v1509
        %1542 = vst [vmem:[#allocation2 + $0x10] sm:$0xff] %v1510
        %1543 = vst [vmem:[#allocation2 + $0x18] sm:$0xff] %v1511
        %1544 = vst [vmem:[#allocation2 + $0x20] sm:$0xff] %v1512
        %1545 = vst [vmem:[#allocation2 + $0x28] sm:$0xff] %v1513
        %1546 = vst [vmem:[#allocation2 + $0x30] sm:$0xff] %v1514
        %1547 = vst [vmem:[#allocation2 + $0x38] sm:$0xff] %v1515
        %1548 = vst [vmem:[#allocation2 + $0x40] sm:$0xff] %v1516
        %1549 = vst [vmem:[#allocation2 + $0x48] sm:$0xff] %v1517
        %1550 = vst [vmem:[#allocation2 + $0x50] sm:$0xff] %v1518
        %1551 = vst [vmem:[#allocation2 + $0x58] sm:$0xff] %v1519
        %1552 = vst [vmem:[#allocation2 + $0x60] sm:$0xff] %v1520
        %1553 = vst [vmem:[#allocation2 + $0x68] sm:$0xff] %v1521
        %1554 = vst [vmem:[#allocation2 + $0x70] sm:$0xff] %v1522
        %1555 = vst [vmem:[#allocation2 + $0x78] sm:$0xff] %v1523
        %1556 = vst [vmem:[#allocation2 + $0x80] sm:$0xff] %v1524
        %1557 = vst [vmem:[#allocation2 + $0x88] sm:$0xff] %v1525
        %1558 = vst [vmem:[#allocation2 + $0x90] sm:$0xff] %v1526
        %1559 = vst [vmem:[#allocation2 + $0x98] sm:$0xff] %v1527
        %1560 = vst [vmem:[#allocation2 + $0xa0] sm:$0xff] %v1528
        %1561 = vst [vmem:[#allocation2 + $0xa8] sm:$0xff] %v1529
        %1562 = vst [vmem:[#allocation2 + $0xb0] sm:$0xff] %v1530
        %1563 = vst [vmem:[#allocation2 + $0xb8] sm:$0xff] %v1531
        %1564 = vst [vmem:[#allocation2 + $0xc0] sm:$0xff] %v1532
        %1565 = vst [vmem:[#allocation2 + $0xc8] sm:$0xff] %v1533
        %1566 = vst [vmem:[#allocation2 + $0xd0] sm:$0xff] %v1534
        %1567 = vst [vmem:[#allocation2 + $0xd8] sm:$0xff] %v1535
        %1568 = vst [vmem:[#allocation2 + $0xe0] sm:$0xff] %v1536
        %1569 = vst [vmem:[#allocation2 + $0xe8] sm:$0xff] %v1537
        %1570 = vst [vmem:[#allocation2 + $0xf0] sm:$0xff] %v1538
        %1571 = vst [vmem:[#allocation2 + $0xf8] sm:$0xff] %v1539
        %p1572 = scmp.eq.s32.totalorder %s30, 1
        // Predicated region
        $region57: #{mlp_pallas.1} parent=39 // pred_check
          %p1573 = pneg %p1572
        $region58: #{mlp_pallas.1} parent=39 // pred_check_branch
          %1575 = sbr.rel (%p1573) target = $region60
        $region59: #{mlp_pallas.1} parent=39 // pred_region
          %v1576 = vld [vmem:[#allocation2] sm:$0xff]
          %v1577 = vld [vmem:[#allocation2 + $0x8] sm:$0xff]
          %v1578 = vld [vmem:[#allocation2 + $0x10] sm:$0xff]
          %v1579 = vld [vmem:[#allocation2 + $0x18] sm:$0xff]
          %v1580 = vld [vmem:[#allocation2 + $0x20] sm:$0xff]
          %v1581 = vld [vmem:[#allocation2 + $0x28] sm:$0xff]
          %v1582 = vld [vmem:[#allocation2 + $0x30] sm:$0xff]
          %v1583 = vld [vmem:[#allocation2 + $0x38] sm:$0xff]
          %v1584 = vld [vmem:[#allocation2 + $0x40] sm:$0xff]
          %v1585 = vld [vmem:[#allocation2 + $0x48] sm:$0xff]
          %v1586 = vld [vmem:[#allocation2 + $0x50] sm:$0xff]
          %v1587 = vld [vmem:[#allocation2 + $0x58] sm:$0xff]
          %v1588 = vld [vmem:[#allocation2 + $0x60] sm:$0xff]
          %v1589 = vld [vmem:[#allocation2 + $0x68] sm:$0xff]
          %v1590 = vld [vmem:[#allocation2 + $0x70] sm:$0xff]
          %v1591 = vld [vmem:[#allocation2 + $0x78] sm:$0xff]
          %v1592 = vld [vmem:[#allocation2 + $0x80] sm:$0xff]
          %v1593 = vld [vmem:[#allocation2 + $0x88] sm:$0xff]
          %v1594 = vld [vmem:[#allocation2 + $0x90] sm:$0xff]
          %v1595 = vld [vmem:[#allocation2 + $0x98] sm:$0xff]
          %v1596 = vld [vmem:[#allocation2 + $0xa0] sm:$0xff]
          %v1597 = vld [vmem:[#allocation2 + $0xa8] sm:$0xff]
          %v1598 = vld [vmem:[#allocation2 + $0xb0] sm:$0xff]
          %v1599 = vld [vmem:[#allocation2 + $0xb8] sm:$0xff]
          %v1600 = vld [vmem:[#allocation2 + $0xc0] sm:$0xff]
          %v1601 = vld [vmem:[#allocation2 + $0xc8] sm:$0xff]
          %v1602 = vld [vmem:[#allocation2 + $0xd0] sm:$0xff]
          %v1603 = vld [vmem:[#allocation2 + $0xd8] sm:$0xff]
          %v1604 = vld [vmem:[#allocation2 + $0xe0] sm:$0xff]
          %v1605 = vld [vmem:[#allocation2 + $0xe8] sm:$0xff]
          %v1606 = vld [vmem:[#allocation2 + $0xf0] sm:$0xff]
          %v1607 = vld [vmem:[#allocation2 + $0xf8] sm:$0xff]
          %v1608 = vld [vmem:[%s4] sm:$0x1]
          %v1610 = vlaneseq
          %v1611 = vshrl.u32 %v1610, 7
          %v1612 = vsub.s32 0, %v1611
          %v1613 = vrot.slane %v1608, %v1612
          %v1615 = vadd.f32 %v1576, %v1613
          %v1616 = vadd.f32 %v1577, %v1613
          %v1617 = vadd.f32 %v1578, %v1613
          %v1618 = vadd.f32 %v1579, %v1613
          %v1619 = vadd.f32 %v1580, %v1613
          %v1620 = vadd.f32 %v1581, %v1613
          %v1621 = vadd.f32 %v1582, %v1613
          %v1622 = vadd.f32 %v1583, %v1613
          %v1623 = vadd.f32 %v1584, %v1613
          %v1624 = vadd.f32 %v1585, %v1613
          %v1625 = vadd.f32 %v1586, %v1613
          %v1626 = vadd.f32 %v1587, %v1613
          %v1627 = vadd.f32 %v1588, %v1613
          %v1628 = vadd.f32 %v1589, %v1613
          %v1629 = vadd.f32 %v1590, %v1613
          %v1630 = vadd.f32 %v1591, %v1613
          %v1631 = vadd.f32 %v1592, %v1613
          %v1632 = vadd.f32 %v1593, %v1613
          %v1633 = vadd.f32 %v1594, %v1613
          %v1634 = vadd.f32 %v1595, %v1613
          %v1635 = vadd.f32 %v1596, %v1613
          %v1636 = vadd.f32 %v1597, %v1613
          %v1637 = vadd.f32 %v1598, %v1613
          %v1638 = vadd.f32 %v1599, %v1613
          %v1639 = vadd.f32 %v1600, %v1613
          %v1640 = vadd.f32 %v1601, %v1613
          %v1641 = vadd.f32 %v1602, %v1613
          %v1642 = vadd.f32 %v1603, %v1613
          %v1643 = vadd.f32 %v1604, %v1613
          %v1644 = vadd.f32 %v1605, %v1613
          %v1645 = vadd.f32 %v1606, %v1613
          %v1646 = vadd.f32 %v1607, %v1613
          %v1647 = vpack.c.bf16 %v1616, %v1615
          %v1648 = vpack.c.bf16 %v1618, %v1617
          %v1649 = vpack.c.bf16 %v1620, %v1619
          %v1650 = vpack.c.bf16 %v1622, %v1621
          %v1651 = vpack.c.bf16 %v1624, %v1623
          %v1652 = vpack.c.bf16 %v1626, %v1625
          %v1653 = vpack.c.bf16 %v1628, %v1627
          %v1654 = vpack.c.bf16 %v1630, %v1629
          %v1655 = vpack.c.bf16 %v1632, %v1631
          %v1656 = vpack.c.bf16 %v1634, %v1633
          %v1657 = vpack.c.bf16 %v1636, %v1635
          %v1658 = vpack.c.bf16 %v1638, %v1637
          %v1659 = vpack.c.bf16 %v1640, %v1639
          %v1660 = vpack.c.bf16 %v1642, %v1641
          %v1661 = vpack.c.bf16 %v1644, %v1643
          %v1662 = vpack.c.bf16 %v1646, %v1645
          %v1679 = vunpack.c.l.b16 %v1647
          %v1680 = vunpack.c.h.b16 %v1647
          %v1681 = vunpack.c.l.b16 %v1648
          %v1682 = vunpack.c.h.b16 %v1648
          %v1683 = vunpack.c.l.b16 %v1649
          %v1684 = vunpack.c.h.b16 %v1649
          %v1685 = vunpack.c.l.b16 %v1650
          %v1686 = vunpack.c.h.b16 %v1650
          %v1687 = vunpack.c.l.b16 %v1651
          %v1688 = vunpack.c.h.b16 %v1651
          %v1689 = vunpack.c.l.b16 %v1652
          %v1690 = vunpack.c.h.b16 %v1652
          %v1691 = vunpack.c.l.b16 %v1653
          %v1692 = vunpack.c.h.b16 %v1653
          %v1693 = vunpack.c.l.b16 %v1654
          %v1694 = vunpack.c.h.b16 %v1654
          %v1695 = vunpack.c.l.b16 %v1655
          %v1696 = vunpack.c.h.b16 %v1655
          %v1697 = vunpack.c.l.b16 %v1656
          %v1698 = vunpack.c.h.b16 %v1656
          %v1699 = vunpack.c.l.b16 %v1657
          %v1700 = vunpack.c.h.b16 %v1657
          %v1701 = vunpack.c.l.b16 %v1658
          %v1702 = vunpack.c.h.b16 %v1658
          %v1703 = vunpack.c.l.b16 %v1659
          %v1704 = vunpack.c.h.b16 %v1659
          %v1705 = vunpack.c.l.b16 %v1660
          %v1706 = vunpack.c.h.b16 %v1660
          %v1707 = vunpack.c.l.b16 %v1661
          %v1708 = vunpack.c.h.b16 %v1661
          %v1709 = vunpack.c.l.b16 %v1662
          %v1710 = vunpack.c.h.b16 %v1662
          %v1711 = vpack.c.b16 %v1679, %v1679
          %v1712 = vpack.c.b16 %v1680, %v1680
          %v1713 = vpack.c.b16 %v1681, %v1681
          %v1714 = vpack.c.b16 %v1682, %v1682
          %v1715 = vpack.c.b16 %v1683, %v1683
          %v1716 = vpack.c.b16 %v1684, %v1684
          %v1717 = vpack.c.b16 %v1685, %v1685
          %v1718 = vpack.c.b16 %v1686, %v1686
          %v1719 = vpack.c.b16 %v1687, %v1687
          %v1720 = vpack.c.b16 %v1688, %v1688
          %v1721 = vpack.c.b16 %v1689, %v1689
          %v1722 = vpack.c.b16 %v1690, %v1690
          %v1723 = vpack.c.b16 %v1691, %v1691
          %v1724 = vpack.c.b16 %v1692, %v1692
          %v1725 = vpack.c.b16 %v1693, %v1693
          %v1726 = vpack.c.b16 %v1694, %v1694
          %v1727 = vpack.c.b16 %v1695, %v1695
          %v1728 = vpack.c.b16 %v1696, %v1696
          %v1729 = vpack.c.b16 %v1697, %v1697
          %v1730 = vpack.c.b16 %v1698, %v1698
          %v1731 = vpack.c.b16 %v1699, %v1699
          %v1732 = vpack.c.b16 %v1700, %v1700
          %v1733 = vpack.c.b16 %v1701, %v1701
          %v1734 = vpack.c.b16 %v1702, %v1702
          %v1735 = vpack.c.b16 %v1703, %v1703
          %v1736 = vpack.c.b16 %v1704, %v1704
          %v1737 = vpack.c.b16 %v1705, %v1705
          %v1738 = vpack.c.b16 %v1706, %v1706
          %v1739 = vpack.c.b16 %v1707, %v1707
          %v1740 = vpack.c.b16 %v1708, %v1708
          %v1741 = vpack.c.b16 %v1709, %v1709
          %v1742 = vpack.c.b16 %v1710, %v1710
          %1775 = vst [vmem:[%s351] sm:$0xf] %v1711
          %1776 = vst [vmem:[%s351 + $0x4] sm:$0xf] %v1712
          %1777 = vst [vmem:[%s351 + $0x8] sm:$0xf] %v1713
          %1778 = vst [vmem:[%s351 + $0xc] sm:$0xf] %v1714
          %1779 = vst [vmem:[%s351 + $0x10] sm:$0xf] %v1715
          %1780 = vst [vmem:[%s351 + $0x14] sm:$0xf] %v1716
          %1781 = vst [vmem:[%s351 + $0x18] sm:$0xf] %v1717
          %1782 = vst [vmem:[%s351 + $0x1c] sm:$0xf] %v1718
          %1783 = vst [vmem:[%s351 + $0x20] sm:$0xf] %v1719
          %1784 = vst [vmem:[%s351 + $0x24] sm:$0xf] %v1720
          %1785 = vst [vmem:[%s351 + $0x28] sm:$0xf] %v1721
          %1786 = vst [vmem:[%s351 + $0x2c] sm:$0xf] %v1722
          %1787 = vst [vmem:[%s351 + $0x30] sm:$0xf] %v1723
          %1788 = vst [vmem:[%s351 + $0x34] sm:$0xf] %v1724
          %1789 = vst [vmem:[%s351 + $0x38] sm:$0xf] %v1725
          %1790 = vst [vmem:[%s351 + $0x3c] sm:$0xf] %v1726
          %1791 = vst [vmem:[%s351 + $0x40] sm:$0xf] %v1727
          %1792 = vst [vmem:[%s351 + $0x44] sm:$0xf] %v1728
          %1793 = vst [vmem:[%s351 + $0x48] sm:$0xf] %v1729
          %1794 = vst [vmem:[%s351 + $0x4c] sm:$0xf] %v1730
          %1795 = vst [vmem:[%s351 + $0x50] sm:$0xf] %v1731
          %1796 = vst [vmem:[%s351 + $0x54] sm:$0xf] %v1732
          %1797 = vst [vmem:[%s351 + $0x58] sm:$0xf] %v1733
          %1798 = vst [vmem:[%s351 + $0x5c] sm:$0xf] %v1734
          %1799 = vst [vmem:[%s351 + $0x60] sm:$0xf] %v1735
          %1800 = vst [vmem:[%s351 + $0x64] sm:$0xf] %v1736
          %1801 = vst [vmem:[%s351 + $0x68] sm:$0xf] %v1737
          %1802 = vst [vmem:[%s351 + $0x6c] sm:$0xf] %v1738
          %1803 = vst [vmem:[%s351 + $0x70] sm:$0xf] %v1739
          %1804 = vst [vmem:[%s351 + $0x74] sm:$0xf] %v1740
          %1805 = vst [vmem:[%s351 + $0x78] sm:$0xf] %v1741
          %1806 = vst [vmem:[%s351 + $0x7c] sm:$0xf] %v1742
        $region60: #{mlp_pallas.1} parent=39 // pred_fallthru
          _
        %s1807 = sand.u32 %s170, 1
        %s1808 = scalar_lea.sflag [#allocation5], %s1807
        %s1809 = sand.u32 %s170, 1
        %s1810 = smul.addr %s1809, 128
        %s1811 = scalar_lea.vmem [#allocation9], %s1810
        // Predicated region
        $region61: #{mlp_pallas.1} parent=39 // pred_check
          %p1812 = pneg %p180
        $region62: #{mlp_pallas.1} parent=39 // pred_check_branch
          %1814 = sbr.rel (%p1812) target = $region64
        $region63: #{mlp_pallas.1} parent=39 // pred_region
          %s1815 = smul.u32 32, %s29
          %s1816 = ssub.s32 50, %s1815
          %p1817 = scmp.lt.s32.totalorder %s1816, 32
          %s1818 = scalar_select %p1817, %s1816, 32
          %s1819 = smul.u32 64, %s1818
          %s1821 = ssub.s32 2048, %s1819
          %1822 = vsyncadd %s1808, %s1821
          %p1823 = scmp.ne.s32.totalorder 0, %s1819
          %s1824 = smul.addr %s1815, 64
          %s1825 = scalar_lea.hbm %s5, %s1824
          %s1826 = smul.u32 4, %s1818
          %s1827 = sshll.u32 %s1811, 4
          %s1828 = int_to_ptr.vmem [resolvable:$true] %s1827
          %s1829 = sshll.u32 %s1826, 4
          %1833 = dma.vmem_to_hbm [thread:$0]  (%p1823), %s1828, %s1829, %s1825, %s1808, 64, 64, 4
        $region64: #{mlp_pallas.1} parent=39 // pred_fallthru
          _
      $region40: #{mlp_pallas.1} parent=5 // pred_fallthru
        _
      %p1834 = scmp.le.s32.totalorder 2, %s20
      // Predicated region
      $region65: #{mlp_pallas.1} parent=5 // pred_check
        %p1835 = pneg %p1834
      $region66: #{mlp_pallas.1} parent=5 // pred_check_branch
        %1837 = sbr.rel (%p1835) target = $region68
      $region67: #{mlp_pallas.1} parent=5 // pred_region
        %s1838 = ssub.s32 %s20, 2
        // Predicated region
        $region69: #{mlp_pallas.1} parent=67 // pred_check
          %p1839 = pneg %p186
        $region70: #{mlp_pallas.1} parent=67 // pred_check_branch
          %1841 = sbr.rel (%p1839) target = $region72
        $region71: #{mlp_pallas.1} parent=67 // pred_region
          %s1842 = sand.u32 %s171, 1
          %s1843 = scalar_lea.sflag [#allocation5], %s1842
          %s1844 = sand.u32 %s171, 1
          %s1845 = smul.addr %s1844, 128
          %s1846 = scalar_lea.vmem [#allocation9], %s1845
          %1847 = dma.done %s1843, 2048
        $region72: #{mlp_pallas.1} parent=67 // pred_fallthru
          _
      $region68: #{mlp_pallas.1} parent=5 // pred_fallthru
        _
    $region6: #{mlp_pallas.1} parent=1 // loop_footer
      %s24 = sadd.s32 1, %s20
    $region7: #{mlp_pallas.1} parent=1 // loop_footer_branch
      %19 = sbr.rel target = $region3
    $region8: #{mlp_pallas.1} parent=1 // loop_exit
      _
    %1848 = vsyncpa [#allocation4], 1
    %s1849 = scalar_lea.sflag [#allocation4], 1
    %1850 = vsyncpa %s1849, 1
    %1851 = vsyncpa [#allocation7], 1
    %s1852 = scalar_lea.sflag [#allocation7], 1
    %1853 = vsyncpa %s1852, 1
    %1854 = vsyncpa [#allocation5], 1
    %s1855 = scalar_lea.sflag [#allocation5], 1
    %1856 = vsyncpa %s1855, 1

</llo_original>
